<compile_context>
chip_gen: v7x
topology: tpu7x:2x2x1
jax: 0.10.0
libtpu: 0.0.40
codegen_flags: <defaults>
</compile_context>

<pallas_src>
import numpy as np
import jax
import jax.numpy as jnp
from jax.experimental import pallas as pl
from jax.experimental.pallas import tpu as pltpu

NUM_CLASS = 60
V = 25          # num_point
C_IN = 3        # in_channels
C_GCN = 64      # SRN feature channels


def _round_up(a, b):
    return (a + b - 1) // b * b


# ----------------------------- skeleton bookkeeping -----------------------------
def joint_full_body():
    # 1-indexed full-body joint list (all 25 joints), as in the reference code.
    return np.arange(1, V + 1)


def occlusion_list():
    # 0-indexed occlusion parts (none / left arm / right arm / legs / trunk / combos)
    return [
        [],
        [4, 5, 6, 7, 21, 22],
        [8, 9, 10, 11, 23, 24],
        [12, 13, 14, 15],
        [16, 17, 18, 19],
        [0, 1, 2, 3, 20],
        [4, 5, 6, 7, 8, 9, 10, 11, 21, 22, 23, 24],
        [12, 13, 14, 15, 16, 17, 18, 19],
    ]


def joint_list():
    return np.arange(V)


# --------------------------------- Pallas kernel ---------------------------------
def _srn_blend_kernel(x_ref, m_ref, wg_ref, b1_ref, wf_ref, b2_ref,
                      rec_ref, rep_ref):
    # x_ref  : (tb, Fin_pad)        original (un-occluded) input, f32
    # m_ref  : (tb or 1, Fin_pad)   occlusion mask, bf16 (0/1); broadcasts if 1 row
    # wg_ref : (Fin_pad, Fhid_pad)  Kronecker-folded graph-conv weight, bf16
    # wf_ref : (Fhid_pad, Fin_pad)  block-diagonal per-joint FC weight, bf16
    m = m_ref[...].astype(jnp.float32)                          # lossless 0/1 cast
    x = x_ref[...]
    xo = x * m                                                  # occlude (f32 VPU)
    h = jnp.dot(xo.astype(jnp.bfloat16), wg_ref[...],
                preferred_element_type=jnp.float32) + b1_ref[...]
    h = jnp.maximum(h, 0.0)                                     # (tb, Fhid_pad)
    rec = jnp.dot(h.astype(jnp.bfloat16), wf_ref[...],
                  preferred_element_type=jnp.float32) + b2_ref[...]
    rec_ref[...] = rec                                          # recover output
    # fused blend: repair = recover*(1-mask) + original*mask
    rep_ref[...] = rec * (1.0 - m) + x * m


def srn_blend(x2, m2, wg, b1g, wf, b2g, tb=1024):
    """Fused SRN + FC-recover + blend over a (B, Fin_pad) slab; B = N*M*T.

    m2 may be either a per-row (B, Fin_pad) mask or a single (1, Fin_pad)
    broadcast row (deterministic occlusion), both bf16.
    """
    B, F_in = x2.shape
    F_hid = wg.shape[1]
    mask_bcast = (m2.shape[0] == 1)

    # Tile selection: big tiles to amortize the ~0.35us per-step overhead, but
    # keep >= ~4 grid tiles so v7x's two TensorCores both get work and the DMA
    # pipeline has depth; multiple of 16 for bf16 sublane packing; don't
    # over-pad tiny test batches.
    tb = max(16, min(tb, _round_up(max(1, pl.cdiv(B, 4)), 16)))
    B_pad = _round_up(B, tb)
    if B_pad != B:
        x2 = jnp.pad(x2, ((0, B_pad - B), (0, 0)))
        if not mask_bcast:
            m2 = jnp.pad(m2, ((0, B_pad - B), (0, 0)))

    if mask_bcast:
        m_spec = pl.BlockSpec((1, F_in), lambda i: (0, 0))
    else:
        m_spec = pl.BlockSpec((tb, F_in), lambda i: (i, 0))

    rec2, rep2 = pl.pallas_call(
        _srn_blend_kernel,
        out_shape=(jax.ShapeDtypeStruct((B_pad, F_in), jnp.float32),
                   jax.ShapeDtypeStruct((B_pad, F_in), jnp.float32)),
        grid_spec=pltpu.PrefetchScalarGridSpec(
            num_scalar_prefetch=0,
            grid=(B_pad // tb,),
            in_specs=[
                pl.BlockSpec((tb, F_in), lambda i: (i, 0)),
                m_spec,
                pl.BlockSpec((F_in, F_hid), lambda i: (0, 0)),
                pl.BlockSpec((1, F_hid), lambda i: (0, 0)),
                pl.BlockSpec((F_hid, F_in), lambda i: (0, 0)),
                pl.BlockSpec((1, F_in), lambda i: (0, 0)),
            ],
            out_specs=[
                pl.BlockSpec((tb, F_in), lambda i: (i, 0)),
                pl.BlockSpec((tb, F_in), lambda i: (i, 0)),
            ],
        ),
        compiler_params=pltpu.CompilerParams(
            dimension_semantics=("parallel",),
            # v5e default scoped VMEM is only 16 MiB; big tiles need more.
            vmem_limit_bytes=48 * 1024 * 1024),
    )(x2, m2, wg, b1g, wf, b2g)
    return rec2[:B], rep2[:B]


# ------------------------------- parameter setup ---------------------------------
def init_params(M):
    kp = jax.random.PRNGKey(42)
    k1, k2, k3 = jax.random.split(kp, 3)
    # SRN graph conv: normalized adjacency (V,V) + channel projection C_IN -> C_GCN
    A = (jnp.eye(V, dtype=jnp.float32) + jnp.ones((V, V), jnp.float32) / V) * 0.5
    w1 = jax.random.normal(k1, (C_IN, C_GCN), jnp.float32) * 0.1
    b1 = jnp.zeros((C_GCN,), jnp.float32)
    # FC recover head: C_GCN -> C_IN per joint
    w2 = jax.random.normal(k2, (C_GCN, C_IN), jnp.float32) * 0.1
    b2 = jnp.zeros((C_IN,), jnp.float32)

    F_in, F_hid = V * C_IN, V * C_GCN                      # 75, 1600
    F_in_p = _round_up(F_in, 128)                          # 128  (lane-dense)
    F_hid_p = _round_up(F_hid, 128)                        # 1664 (lane-dense)

    # fold graph conv into one (V*C_IN, V*C_GCN) matmul weight
    # (out[b,v,d] = sum_{u,c} x[b,u,c] A[u,v] W1[c,d])
    wg = jnp.einsum('uv,cd->ucvd', A, w1).reshape(F_in, F_hid)
    b1g = jnp.broadcast_to(b1[None, None, :], (1, V, C_GCN)).reshape(1, F_hid)
    # fold per-joint FC into a block-diagonal (V*C_GCN, V*C_IN) matmul weight
    wf = jnp.einsum('pv,de->pdve', jnp.eye(V, dtype=jnp.float32), w2).reshape(
        F_hid, F_in)
    b2g = jnp.broadcast_to(b2[None, None, :], (1, V, C_IN)).reshape(1, F_in)

    # lane-pad to multiples of 128 (zero pads keep the math exact) and cast the
    # matmul weights to bf16 (f32 accumulation in-kernel).
    pad2 = lambda a, r, c: jnp.pad(a, ((0, r - a.shape[0]), (0, c - a.shape[1])))
    wg = pad2(wg, F_in_p, F_hid_p).astype(jnp.bfloat16)
    b1g = pad2(b1g, 1, F_hid_p)
    wf = pad2(wf, F_hid_p, F_in_p).astype(jnp.bfloat16)
    b2g = pad2(b2g, 1, F_in_p)

    # action-recognition head stand-in (plain XLA)
    f_cls = C_IN * V * M
    wc = jax.random.normal(k3, (f_cls, NUM_CLASS), jnp.float32) * 0.05
    bc = jnp.zeros((1, NUM_CLASS), jnp.float32)
    return dict(wg=wg, b1g=b1g, wf=wf, b2g=b2g, wc=wc, bc=bc)


# ---------------------------------- forward pass ----------------------------------
def testing_student_forward(x, params, part, tb=1024):
    N, C, T, Vx, M = x.shape
    fb = joint_full_body() - 1          # 0-indexed full-body joints (all 25 here)
    occ = occlusion_list()
    joints = joint_list()
    # The fused blend assumes the full-body joint set covers every joint
    # (true for this model); a subset would need a scatter back into Vx.
    assert len(fb) == Vx
    identity_fb = bool(np.array_equal(fb, np.arange(Vx)))

    F_real = Vx * C                           # 75
    F_pad = _round_up(F_real, 128)            # 128

    # reorder to kernel layout (B, V*C) with B = N*M*T, lane-pad to 128;
    # skip the gather when full_body is the identity permutation (it is).
    def to_b_vc(a):
        if not identity_fb:
            a = a[:, :, :, fb, :]
        a2 = jnp.transpose(a, (0, 4, 2, 3, 1)).reshape(N * M * T, F_real)
        return jnp.pad(a2, ((0, 0), (0, F_pad - F_real)))

    x2 = to_b_vc(x)          # original (un-occluded) data; occlusion applied in-kernel

    # x_mask construction.
    # NOTE: reference hardcodes 300 frames; we use T for the small-shape run.
    if part < 8:
        # Deterministic occlusion: mask depends only on the joint, so the kernel
        # gets a single broadcast row (0/1, bf16 is lossless) instead of a
        # (B, F_pad) slab, and the returned mask is a cheap device broadcast.
        joint_keep = np.ones((Vx,), np.float32)
        joint_keep[occ[part]] = 0.0
        row = np.zeros((1, F_pad), np.float32)
        row[0, :F_real] = np.repeat(joint_keep, C)       # feature order is (v, c)
        m2 = jnp.asarray(row, dtype=jnp.bfloat16)
        x_mask = jnp.broadcast_to(
            jnp.asarray(joint_keep)[None, None, None, :, None],
            (N, C, T, Vx, M)).astype(jnp.float32)
    else:
        # deterministic stand-in for np.random.choice in the reference
        rng = np.random.default_rng(0)
        miss_rate = 0.2 + (part - 8) * 0.1
        x_mask_np = np.ones((N, C, T, Vx, M), dtype=np.float32)
        for i_b in range(N):
            for t in range(T):
                k = int(len(joints) * miss_rate)
                jocc = rng.choice(joints, k, replace=False)
                x_mask_np[i_b, :, t, jocc, :] = 0.0
        x_mask = jnp.asarray(x_mask_np)
        m2 = to_b_vc(x_mask).astype(jnp.bfloat16)        # per-row mask path

    # fused: occlude -> graph conv -> relu -> per-joint FC -> blend with original
    rec2, rep2 = srn_blend(x2, m2, params['wg'], params['b1g'],
                           params['wf'], params['b2g'], tb=tb)
    rec2 = rec2[:, :F_real]
    rep2 = rep2[:, :F_real]

    # (B, V*C) -> (N, M, T, V, C) -> (N, C, T, V, M) for the returned recover tensor
    recover_parts = jnp.transpose(rec2.reshape(N, M, T, Vx, C), (0, 4, 2, 3, 1))

    # TODO(synk): MS_G3D / AAGCN_VA_RICH backbones are not defined in the reference
    # source; stand-in = mean-pool over frames + linear head to 60 classes, computed
    # in plain XLA directly from the kernel's (B, V*C) repair slab (no full-tensor
    # transposes; only a tiny (N,M,V,C) tensor is reordered).
    rep_nmvc = jnp.mean(rep2.reshape(N, M, T, Vx, C), axis=2)       # (N, M, V, C)
    feat = jnp.transpose(rep_nmvc, (0, 3, 2, 1)).reshape(N, C * Vx * M)  # (c,v,m) order
    predict_action = feat @ params['wc'] + params['bc']

    return recover_parts, predict_action, x_mask


# -------------------------------------- main --------------------------------------
if __name__ == "__main__":
    N, C, T, M = 2, 3, 8, 2
    key = jax.random.PRNGKey(0)
    x = jax.random.normal(key, (N, C, T, V, M), jnp.float32)
    params = init_params(M)

    part = 1   # deterministic occlusion branch (part < 8)
    recover_parts, predict_action, x_mask = testing_student_forward(x, params, part)
    jax.block_until_ready((recover_parts, predict_action, x_mask))

    assert recover_parts.shape == (N, C, T, V, M)
    assert predict_action.shape == (N, NUM_CLASS)
    assert x_mask.shape == (N, C, T, V, M)
    assert bool(jnp.all(jnp.isfinite(recover_parts)))
    assert bool(jnp.all(jnp.isfinite(predict_action)))
    print("KERNEL_OK")
</pallas_src>

<mosaic_0001>
module attributes {stable_mosaic.version = 11 : i64} {
  func.func @_srn_blend_kernel(%arg0: i32, %arg1: memref<16x128xf32, #tpu.memory_space<vmem>>, %arg2: memref<1x128xbf16, #tpu.memory_space<vmem>>, %arg3: memref<128x1664xbf16, #tpu.memory_space<vmem>>, %arg4: memref<1x1664xf32, #tpu.memory_space<vmem>>, %arg5: memref<1664x128xbf16, #tpu.memory_space<vmem>>, %arg6: memref<1x128xf32, #tpu.memory_space<vmem>>, %arg7: memref<16x128xf32, #tpu.memory_space<vmem>>, %arg8: memref<16x128xf32, #tpu.memory_space<vmem>>) attributes {dimension_semantics = [#tpu.dimension_semantics<parallel>], iteration_bounds = array<i64: 2>, scalar_prefetch = 0 : i64, scratch_operands = 0 : i64, tpu.core_type = #tpu.core_type<tc>, window_params = [{transform_indices = @transform_0, window_bounds = array<i64: 16, 128>}, {pipeline_mode = #tpu.pipeline_mode<synchronous>, transform_indices = @transform_1, window_bounds = array<i64: 1, 128>}, {pipeline_mode = #tpu.pipeline_mode<synchronous>, transform_indices = @transform_2, window_bounds = array<i64: 128, 1664>}, {pipeline_mode = #tpu.pipeline_mode<synchronous>, transform_indices = @transform_3, window_bounds = array<i64: 1, 1664>}, {pipeline_mode = #tpu.pipeline_mode<synchronous>, transform_indices = @transform_4, window_bounds = array<i64: 1664, 128>}, {pipeline_mode = #tpu.pipeline_mode<synchronous>, transform_indices = @transform_5, window_bounds = array<i64: 1, 128>}, {transform_indices = @transform_6, window_bounds = array<i64: 16, 128>}, {transform_indices = @transform_7, window_bounds = array<i64: 16, 128>}]} {
    %c0 = arith.constant 0 : index
    %c0_0 = arith.constant 0 : index
    %0 = vector.load %arg2[%c0, %c0_0] : memref<1x128xbf16, #tpu.memory_space<vmem>>, vector<1x128xbf16>
    %1 = arith.extf %0 : vector<1x128xbf16> to vector<1x128xf32>
    %c0_1 = arith.constant 0 : index
    %c0_2 = arith.constant 0 : index
    %2 = vector.load %arg1[%c0_1, %c0_2] : memref<16x128xf32, #tpu.memory_space<vmem>>, vector<16x128xf32>
    %3 = vector.broadcast %1 : vector<1x128xf32> to vector<16x128xf32>
    %4 = arith.mulf %2, %3 : vector<16x128xf32>
    %5 = arith.truncf %4 : vector<16x128xf32> to vector<16x128xbf16>
    %c0_3 = arith.constant 0 : index
    %c0_4 = arith.constant 0 : index
    %6 = vector.load %arg3[%c0_3, %c0_4] : memref<128x1664xbf16, #tpu.memory_space<vmem>>, vector<128x1664xbf16>
    %cst = arith.constant dense<0.000000e+00> : vector<16x1664xf32>
    %7 = tpu.matmul %5, %6, %cst {dimension_numbers = #tpu.dot_dimension_numbers<[1], [0], [0], [1], [0, 0, 1, 1], [], []>} : vector<16x128xbf16>, vector<128x1664xbf16>, vector<16x1664xf32> -> vector<16x1664xf32>
    %c0_5 = arith.constant 0 : index
    %c0_6 = arith.constant 0 : index
    %8 = vector.load %arg4[%c0_5, %c0_6] : memref<1x1664xf32, #tpu.memory_space<vmem>>, vector<1x1664xf32>
    %9 = vector.broadcast %8 : vector<1x1664xf32> to vector<16x1664xf32>
    %10 = arith.addf %7, %9 : vector<16x1664xf32>
    %cst_7 = arith.constant 0.000000e+00 : f32
    %11 = vector.broadcast %cst_7 : f32 to vector<16x1664xf32>
    %12 = arith.maximumf %10, %11 : vector<16x1664xf32>
    %13 = arith.truncf %12 : vector<16x1664xf32> to vector<16x1664xbf16>
    %c0_8 = arith.constant 0 : index
    %c0_9 = arith.constant 0 : index
    %14 = vector.load %arg5[%c0_8, %c0_9] : memref<1664x128xbf16, #tpu.memory_space<vmem>>, vector<1664x128xbf16>
    %cst_10 = arith.constant dense<0.000000e+00> : vector<16x128xf32>
    %15 = tpu.matmul %13, %14, %cst_10 {dimension_numbers = #tpu.dot_dimension_numbers<[1], [0], [0], [1], [0, 0, 1, 1], [], []>} : vector<16x1664xbf16>, vector<1664x128xbf16>, vector<16x128xf32> -> vector<16x128xf32>
    %c0_11 = arith.constant 0 : index
    %c0_12 = arith.constant 0 : index
    %16 = vector.load %arg6[%c0_11, %c0_12] : memref<1x128xf32, #tpu.memory_space<vmem>>, vector<1x128xf32>
    %17 = vector.broadcast %16 : vector<1x128xf32> to vector<16x128xf32>
    %18 = arith.addf %15, %17 : vector<16x128xf32>
    %c0_13 = arith.constant 0 : index
    %c0_14 = arith.constant 0 : index
    %19 = vector.load %arg7[%c0_13, %c0_14] : memref<16x128xf32, #tpu.memory_space<vmem>>, vector<16x128xf32>
    tpu.vector_store %arg7[%c0_13, %c0_14], %18 {strides = array<i32>} : memref<16x128xf32, #tpu.memory_space<vmem>>, vector<16x128xf32>,
    %cst_15 = arith.constant 1.000000e+00 : f32
    %20 = vector.broadcast %cst_15 : f32 to vector<1x128xf32>
    %21 = arith.subf %20, %1 : vector<1x128xf32>
    %22 = vector.broadcast %21 : vector<1x128xf32> to vector<16x128xf32>
    %23 = arith.mulf %18, %22 : vector<16x128xf32>
    %24 = vector.broadcast %1 : vector<1x128xf32> to vector<16x128xf32>
    %25 = arith.mulf %2, %24 : vector<16x128xf32>
    %26 = arith.addf %23, %25 : vector<16x128xf32>
    %c0_16 = arith.constant 0 : index
    %c0_17 = arith.constant 0 : index
    %27 = vector.load %arg8[%c0_16, %c0_17] : memref<16x128xf32, #tpu.memory_space<vmem>>, vector<16x128xf32>
    tpu.vector_store %arg8[%c0_16, %c0_17], %26 {strides = array<i32>} : memref<16x128xf32, #tpu.memory_space<vmem>>, vector<16x128xf32>,
    return
  }
  func.func @transform_0(%arg0: i32) -> (i32, i32) {
    %c0_i32 = arith.constant 0 : i32
    %c0_i32_0 = arith.constant 0 : i32
    return %arg0, %c0_i32 : i32, i32
  }
  func.func @transform_1(%arg0: i32) -> (i32, i32) {
    %c0_i32 = arith.constant 0 : i32
    %c0_i32_0 = arith.constant 0 : i32
    %c0_i32_1 = arith.constant 0 : i32
    return %c0_i32, %c0_i32_0 : i32, i32
  }
  func.func @transform_2(%arg0: i32) -> (i32, i32) {
    %c0_i32 = arith.constant 0 : i32
    %c0_i32_0 = arith.constant 0 : i32
    %c0_i32_1 = arith.constant 0 : i32
    return %c0_i32, %c0_i32_0 : i32, i32
  }
  func.func @transform_3(%arg0: i32) -> (i32, i32) {
    %c0_i32 = arith.constant 0 : i32
    %c0_i32_0 = arith.constant 0 : i32
    %c0_i32_1 = arith.constant 0 : i32
    return %c0_i32, %c0_i32_0 : i32, i32
  }
  func.func @transform_4(%arg0: i32) -> (i32, i32) {
    %c0_i32 = arith.constant 0 : i32
    %c0_i32_0 = arith.constant 0 : i32
    %c0_i32_1 = arith.constant 0 : i32
    return %c0_i32, %c0_i32_0 : i32, i32
  }
  func.func @transform_5(%arg0: i32) -> (i32, i32) {
    %c0_i32 = arith.constant 0 : i32
    %c0_i32_0 = arith.constant 0 : i32
    %c0_i32_1 = arith.constant 0 : i32
    return %c0_i32, %c0_i32_0 : i32, i32
  }
  func.func @transform_6(%arg0: i32) -> (i32, i32) {
    %c0_i32 = arith.constant 0 : i32
    %c0_i32_0 = arith.constant 0 : i32
    return %arg0, %c0_i32 : i32, i32
  }
  func.func @transform_7(%arg0: i32) -> (i32, i32) {
    %c0_i32 = arith.constant 0 : i32
    %c0_i32_0 = arith.constant 0 : i32
    return %arg0, %c0_i32 : i32, i32
  }
}

</mosaic_0001>

<llo_original>
// kernel: tpu_custom_call.1
$region0: #{tpu_custom_call.1}
  #allocation0 [shape = 'u32[]', space=smem, size = 0x4, offset = 0x4, fixed_abs, tag = 'smem constant byte address 0x4 - core index']
  #allocation1 [shape = 'u32[144,128]{1,0:T(1,128)}', space=vmem, size = 0x12000, scoped, tag = 'internal scratch']
  %s0 = inlined_call_operand.hbm [shape: f32[32,128], index: 0, kind: input, shape index: {}]
  %s1 = inlined_call_operand.vmem [shape: bf16[1,128], index: 1, kind: input, shape index: {}]
  %s2 = inlined_call_operand.hbm [shape: bf16[128,1664], index: 2, kind: input, shape index: {}]
  %s3 = inlined_call_operand.hbm [shape: f32[1,1664], index: 3, kind: input, shape index: {}]
  %s4 = inlined_call_operand.hbm [shape: bf16[1664,128], index: 4, kind: input, shape index: {}]
  %s5 = inlined_call_operand.vmem [shape: f32[1,128], index: 5, kind: input, shape index: {}]
  %s6 = inlined_call_operand.hbm [shape: f32[32,128], index: 6, kind: output, shape index: {0}]
  %s7 = inlined_call_operand.hbm [shape: f32[32,128], index: 7, kind: output, shape index: {1}]
  %8 = xla_tuple %s6, %s7
  %s9 = sld [smem:[#allocation0]]
  $region81: #{tpu_custom_call.1} parent=0
    _
  %s11 = ssub.s32 1, %s9
  %s12 = scalar_select 0, %s11, %s9
  $region1: #{tpu_custom_call.1} parent=0
    #allocation2 [shape = 'u8[16384]{0}', space=vmem, size = 0x4000, scoped, tag = 'input window, operand 0']
    #allocation3 [shape = 's32[2]{0}', space=sflag, size = 0x8, scoped, tag = 'scoped memory for tpu_custom_call.1']
    #allocation4 [shape = 's32[2]{0}', space=sflag, size = 0x8, scoped, tag = 'scoped memory for tpu_custom_call.1']
    #allocation5 [shape = 'u8[425984]{0}', space=vmem, size = 0x68000, scoped, tag = 'input window, operand 2, single buffered']
    #allocation6 [shape = 's32[1]{0}', space=sflag, size = 0x4, scoped, tag = 'scoped memory for tpu_custom_call.1']
    #allocation7 [shape = 'u8[6656]{0}', space=vmem, size = 0x1c00, scoped, tag = 'input window, operand 3, single buffered']
    #allocation8 [shape = 'u8[425984]{0}', space=vmem, size = 0x68000, scoped, tag = 'input window, operand 4, single buffered']
    #allocation9 [shape = 's32[1]{0}', space=sflag, size = 0x4, scoped, tag = 'scoped memory for tpu_custom_call.1']
    #allocation10 [shape = 'u8[16384]{0}', space=vmem, size = 0x4000, scoped, tag = 'output window, operand 0']
    #allocation11 [shape = 'u8[16384]{0}', space=vmem, size = 0x4000, scoped, tag = 'output window, operand 1']
    #allocation12 [shape = 's32[2]{0}', space=sflag, size = 0x8, scoped, tag = 'scoped memory for tpu_custom_call.1']
    %13 = vsyncpa [#allocation3], 0
    %s14 = scalar_lea.sflag [#allocation3], 1
    %15 = vsyncpa %s14, 0
    %16 = vsyncpa [#allocation6], 0
    %17 = vsyncpa [#allocation9], 0
    %18 = vsyncpa [#allocation4], 0
    %s19 = scalar_lea.sflag [#allocation4], 1
    %20 = vsyncpa %s19, 0
    %21 = vsyncpa [#allocation12], 0
    %s22 = scalar_lea.sflag [#allocation12], 1
    %23 = vsyncpa %s22, 0
    loop: start=0, step=1, limit=4
    $region2: #{tpu_custom_call.1} parent=1 // loop_pre_header
      _
    $region3: #{tpu_custom_call.1} parent=1 // loop_header
      %s25 = sphi 0, %s29
      %p26 = scmp.ge.s32.totalorder %s25, 4
      %s35 = sphi 0, %s37
      %s38 = sphi 0, %s35
      %s39 = sphi 0, %s38
      %s55 = sphi 0, %s39
      %s59 = sphi 0, %s59
      %s61 = sphi 0, %s59
      %s62 = sphi 0, %s61
      %s76 = sphi 0, %s62
      %s80 = sphi 0, %s80
      %s82 = sphi 0, %s80
      %s83 = sphi 0, %s82
      %s97 = sphi 0, %s83
      %s101 = sphi 0, %s101
      %s103 = sphi 0, %s101
      %s104 = sphi 0, %s103
      %s118 = sphi 0, %s104
      %s122 = sphi 0, %s122
      %s124 = sphi 0, %s122
      %s125 = sphi 0, %s124
      %s139 = sphi 0, %s125
      %s143 = sphi 0, %s143
      %s145 = sphi 0, %s143
      %s146 = sphi 0, %s145
      %s160 = sphi 0, %s146
      %s166 = sphi 0, %s168
      %s169 = sphi 0, %s166
      %s170 = sphi 0, %s169
      %s186 = sphi 0, %s170
      %s192 = sphi 0, %s194
      %s195 = sphi 0, %s192
      %s196 = sphi 0, %s195
      %s212 = sphi 0, %s196
    $region4: #{tpu_custom_call.1} parent=1 // loop_header_branch
      %28 = sbr.rel (%p26) target = $region8
    $region5: #{tpu_custom_call.1} parent=1 // loop_body
      %s30 = ssub.s32 %s25, 1
      %s31 = ssub.s32 %s25, 2
      %s32 = sadd.s32 %s25, 1
      %s33 = ssub.s32 %s25, %s32
      %p34 = scmp.eq.s32.totalorder %s33, 0
      %s36 = sadd.s32 %s35, 1
      %s37 = scalar_select %p34, %s35, %s36
      %p40 = pneg %p34
      %p41 = scmp.eq.s32.totalorder %s25, 1
      %p42 = por %p40, %p41
      %p43 = scmp.ne.s32.totalorder %s35, %s38
      %p44 = scmp.eq.s32.totalorder %s25, 0
      %p45 = por %p43, %p44
      %p46 = scmp.ne.s32.totalorder %s35, %s38
      %p47 = scmp.eq.s32.totalorder %s30, 1
      %p48 = por %p46, %p47
      %p49 = scmp.ne.s32.totalorder %s38, %s39
      %p50 = scmp.eq.s32.totalorder %s30, 0
      %p51 = por %p49, %p50
      %p52 = scmp.ne.s32.totalorder %s38, %s39
      %p53 = scmp.eq.s32.totalorder %s31, 1
      %p54 = por %p52, %p53
      %p56 = scmp.ne.s32.totalorder %s39, %s55
      %p57 = scmp.eq.s32.totalorder %s31, 0
      %p58 = por %p56, %p57
      %s60 = sadd.s32 %s59, 1
      %p63 = scmp.eq.s32.totalorder %s25, 1
      %p64 = scmp.ne.s32.totalorder %s59, %s61
      %p65 = scmp.eq.s32.totalorder %s25, 0
      %p66 = por %p64, %p65
      %p67 = scmp.ne.s32.totalorder %s59, %s61
      %p68 = scmp.eq.s32.totalorder %s30, 1
      %p69 = por %p67, %p68
      %p70 = scmp.ne.s32.totalorder %s61, %s62
      %p71 = scmp.eq.s32.totalorder %s30, 0
      %p72 = por %p70, %p71
      %p73 = scmp.ne.s32.totalorder %s61, %s62
      %p74 = scmp.eq.s32.totalorder %s31, 1
      %p75 = por %p73, %p74
      %p77 = scmp.ne.s32.totalorder %s62, %s76
      %p78 = scmp.eq.s32.totalorder %s31, 0
      %p79 = por %p77, %p78
      %s81 = sadd.s32 %s80, 1
      %p84 = scmp.eq.s32.totalorder %s25, 1
      %p85 = scmp.ne.s32.totalorder %s80, %s82
      %p86 = scmp.eq.s32.totalorder %s25, 0
      %p87 = por %p85, %p86
      %p88 = scmp.ne.s32.totalorder %s80, %s82
      %p89 = scmp.eq.s32.totalorder %s30, 1
      %p90 = por %p88, %p89
      %p91 = scmp.ne.s32.totalorder %s82, %s83
      %p92 = scmp.eq.s32.totalorder %s30, 0
      %p93 = por %p91, %p92
      %p94 = scmp.ne.s32.totalorder %s82, %s83
      %p95 = scmp.eq.s32.totalorder %s31, 1
      %p96 = por %p94, %p95
      %p98 = scmp.ne.s32.totalorder %s83, %s97
      %p99 = scmp.eq.s32.totalorder %s31, 0
      %p100 = por %p98, %p99
      %s102 = sadd.s32 %s101, 1
      %p105 = scmp.eq.s32.totalorder %s25, 1
      %p106 = scmp.ne.s32.totalorder %s101, %s103
      %p107 = scmp.eq.s32.totalorder %s25, 0
      %p108 = por %p106, %p107
      %p109 = scmp.ne.s32.totalorder %s101, %s103
      %p110 = scmp.eq.s32.totalorder %s30, 1
      %p111 = por %p109, %p110
      %p112 = scmp.ne.s32.totalorder %s103, %s104
      %p113 = scmp.eq.s32.totalorder %s30, 0
      %p114 = por %p112, %p113
      %p115 = scmp.ne.s32.totalorder %s103, %s104
      %p116 = scmp.eq.s32.totalorder %s31, 1
      %p117 = por %p115, %p116
      %p119 = scmp.ne.s32.totalorder %s104, %s118
      %p120 = scmp.eq.s32.totalorder %s31, 0
      %p121 = por %p119, %p120
      %s123 = sadd.s32 %s122, 1
      %p126 = scmp.eq.s32.totalorder %s25, 1
      %p127 = scmp.ne.s32.totalorder %s122, %s124
      %p128 = scmp.eq.s32.totalorder %s25, 0
      %p129 = por %p127, %p128
      %p130 = scmp.ne.s32.totalorder %s122, %s124
      %p131 = scmp.eq.s32.totalorder %s30, 1
      %p132 = por %p130, %p131
      %p133 = scmp.ne.s32.totalorder %s124, %s125
      %p134 = scmp.eq.s32.totalorder %s30, 0
      %p135 = por %p133, %p134
      %p136 = scmp.ne.s32.totalorder %s124, %s125
      %p137 = scmp.eq.s32.totalorder %s31, 1
      %p138 = por %p136, %p137
      %p140 = scmp.ne.s32.totalorder %s125, %s139
      %p141 = scmp.eq.s32.totalorder %s31, 0
      %p142 = por %p140, %p141
      %s144 = sadd.s32 %s143, 1
      %p147 = scmp.eq.s32.totalorder %s25, 1
      %p148 = scmp.ne.s32.totalorder %s143, %s145
      %p149 = scmp.eq.s32.totalorder %s25, 0
      %p150 = por %p148, %p149
      %p151 = scmp.ne.s32.totalorder %s143, %s145
      %p152 = scmp.eq.s32.totalorder %s30, 1
      %p153 = por %p151, %p152
      %p154 = scmp.ne.s32.totalorder %s145, %s146
      %p155 = scmp.eq.s32.totalorder %s30, 0
      %p156 = por %p154, %p155
      %p157 = scmp.ne.s32.totalorder %s145, %s146
      %p158 = scmp.eq.s32.totalorder %s31, 1
      %p159 = por %p157, %p158
      %p161 = scmp.ne.s32.totalorder %s146, %s160
      %p162 = scmp.eq.s32.totalorder %s31, 0
      %p163 = por %p161, %p162
      %s164 = ssub.s32 %s25, %s32
      %p165 = scmp.eq.s32.totalorder %s164, 0
      %s167 = sadd.s32 %s166, 1
      %s168 = scalar_select %p165, %s166, %s167
      %p171 = pneg %p165
      %p172 = scmp.eq.s32.totalorder %s25, 1
      %p173 = por %p171, %p172
      %p174 = scmp.ne.s32.totalorder %s166, %s169
      %p175 = scmp.eq.s32.totalorder %s25, 0
      %p176 = por %p174, %p175
      %p177 = scmp.ne.s32.totalorder %s166, %s169
      %p178 = scmp.eq.s32.totalorder %s30, 1
      %p179 = por %p177, %p178
      %p180 = scmp.ne.s32.totalorder %s169, %s170
      %p181 = scmp.eq.s32.totalorder %s30, 0
      %p182 = por %p180, %p181
      %p183 = scmp.ne.s32.totalorder %s169, %s170
      %p184 = scmp.eq.s32.totalorder %s31, 1
      %p185 = por %p183, %p184
      %p187 = scmp.ne.s32.totalorder %s170, %s186
      %p188 = scmp.eq.s32.totalorder %s31, 0
      %p189 = por %p187, %p188
      %s190 = ssub.s32 %s25, %s32
      %p191 = scmp.eq.s32.totalorder %s190, 0
      %s193 = sadd.s32 %s192, 1
      %s194 = scalar_select %p191, %s192, %s193
      %p197 = pneg %p191
      %p198 = scmp.eq.s32.totalorder %s25, 1
      %p199 = por %p197, %p198
      %p200 = scmp.ne.s32.totalorder %s192, %s195
      %p201 = scmp.eq.s32.totalorder %s25, 0
      %p202 = por %p200, %p201
      %p203 = scmp.ne.s32.totalorder %s192, %s195
      %p204 = scmp.eq.s32.totalorder %s30, 1
      %p205 = por %p203, %p204
      %p206 = scmp.ne.s32.totalorder %s195, %s196
      %p207 = scmp.eq.s32.totalorder %s30, 0
      %p208 = por %p206, %p207
      %p209 = scmp.ne.s32.totalorder %s195, %s196
      %p210 = scmp.eq.s32.totalorder %s31, 1
      %p211 = por %p209, %p210
      %p213 = scmp.ne.s32.totalorder %s196, %s212
      %p214 = scmp.eq.s32.totalorder %s31, 0
      %p215 = por %p213, %p214
      %p216 = scmp.le.s32.totalorder 1, %s25
      %p217 = scmp.lt.s32.totalorder %s25, 3
      %p218 = pnand %p216, %p217
      %p219 = pneg %p218
      // Predicated region
      $region9: #{tpu_custom_call.1} parent=5 // pred_check
        _
      $region10: #{tpu_custom_call.1} parent=5 // pred_check_branch
        %221 = sbr.rel (%p218) target = $region12
      $region11: #{tpu_custom_call.1} parent=5 // pred_region
        %s222 = ssub.s32 %s25, 1
        // Predicated region
        $region13: #{tpu_custom_call.1} parent=11 // pred_check
          %p223 = pneg %p72
        $region14: #{tpu_custom_call.1} parent=11 // pred_check_branch
          %225 = sbr.rel (%p223) target = $region16
        $region15: #{tpu_custom_call.1} parent=11 // pred_region
          _
        $region16: #{tpu_custom_call.1} parent=11 // pred_fallthru
          _
        // Predicated region
        $region17: #{tpu_custom_call.1} parent=11 // pred_check
          %p226 = pneg %p93
        $region18: #{tpu_custom_call.1} parent=11 // pred_check_branch
          %228 = sbr.rel (%p226) target = $region20
        $region19: #{tpu_custom_call.1} parent=11 // pred_region
          %s230 = ssub.s32 13312, 13312
          %231 = vsyncadd [#allocation6], %s230
          %s232 = sshll.u32 [#allocation5], 4
          %s233 = int_to_ptr.vmem [resolvable:$true] %s232
          %238 = dma.hbm_to_vmem [thread:$0]  %s2, 13312, %s233, [#allocation6], 832, 832, 52
        $region20: #{tpu_custom_call.1} parent=11 // pred_fallthru
          _
        // Predicated region
        $region21: #{tpu_custom_call.1} parent=11 // pred_check
          %p239 = pneg %p114
        $region22: #{tpu_custom_call.1} parent=11 // pred_check_branch
          %241 = sbr.rel (%p239) target = $region24
        $region23: #{tpu_custom_call.1} parent=11 // pred_region
          %s243 = ssub.s32 208, 208
          %244 = vsyncadd [#allocation6], %s243
          %s246 = sshll.u32 [#allocation7], 4
          %s247 = int_to_ptr.vmem [resolvable:$true] %s246
          %249 = dma.hbm_to_vmem [thread:$0]  %s3, 208, %s247, [#allocation6]
        $region24: #{tpu_custom_call.1} parent=11 // pred_fallthru
          _
        // Predicated region
        $region25: #{tpu_custom_call.1} parent=11 // pred_check
          %p250 = pneg %p135
        $region26: #{tpu_custom_call.1} parent=11 // pred_check_branch
          %252 = sbr.rel (%p250) target = $region28
        $region27: #{tpu_custom_call.1} parent=11 // pred_region
          %s254 = ssub.s32 13312, 13312
          %255 = vsyncadd [#allocation9], %s254
          %s256 = sshll.u32 [#allocation8], 4
          %s257 = int_to_ptr.vmem [resolvable:$true] %s256
          %262 = dma.hbm_to_vmem [thread:$0]  %s4, 13312, %s257, [#allocation9], 64, 64, 4
        $region28: #{tpu_custom_call.1} parent=11 // pred_fallthru
          _
        // Predicated region
        $region29: #{tpu_custom_call.1} parent=11 // pred_check
          %p263 = pneg %p156
        $region30: #{tpu_custom_call.1} parent=11 // pred_check_branch
          %265 = sbr.rel (%p263) target = $region32
        $region31: #{tpu_custom_call.1} parent=11 // pred_region
          _
        $region32: #{tpu_custom_call.1} parent=11 // pred_fallthru
          _
      $region12: #{tpu_custom_call.1} parent=5 // pred_fallthru
        _
      %p266 = scmp.lt.s32.totalorder %s25, 2
      // Predicated region
      $region33: #{tpu_custom_call.1} parent=5 // pred_check
        %p267 = pneg %p266
      $region34: #{tpu_custom_call.1} parent=5 // pred_check_branch
        %269 = sbr.rel (%p267) target = $region36
      $region35: #{tpu_custom_call.1} parent=5 // pred_region
        // Predicated region
        $region37: #{tpu_custom_call.1} parent=35 // pred_check
          %p270 = pneg %p45
        $region38: #{tpu_custom_call.1} parent=35 // pred_check_branch
          %272 = sbr.rel (%p270) target = $region40
        $region39: #{tpu_custom_call.1} parent=35 // pred_region
          %s273 = sand.u32 %s35, 1
          %s274 = scalar_lea.sflag [#allocation3], %s273
          %s275 = sand.u32 %s35, 1
          %s276 = smul.addr %s275, 16
          %s277 = scalar_lea.vmem [#allocation2], %s276
          %s278 = smul.u32 2, %s25
          %s280 = ssub.s32 256, 256
          %281 = vsyncadd %s274, %s280
          %s282 = smul.addr %s278, 128
          %s283 = scalar_lea.hbm %s0, %s282
          %s284 = sshll.u32 %s277, 4
          %s285 = int_to_ptr.vmem [resolvable:$true] %s284
          %290 = dma.hbm_to_vmem [thread:$0]  %s283, 256, %s285, %s274, 128, 128, 8
        $region40: #{tpu_custom_call.1} parent=35 // pred_fallthru
          _
      $region36: #{tpu_custom_call.1} parent=5 // pred_fallthru
        _
      %p291 = scmp.le.s32.totalorder 1, %s25
      %p292 = scmp.lt.s32.totalorder %s25, 3
      %p293 = pnand %p291, %p292
      %p294 = pneg %p293
      // Predicated region
      $region41: #{tpu_custom_call.1} parent=5 // pred_check
        _
      $region42: #{tpu_custom_call.1} parent=5 // pred_check_branch
        %296 = sbr.rel (%p293) target = $region44
      $region43: #{tpu_custom_call.1} parent=5 // pred_region
        %s297 = ssub.s32 %s25, 1
        %s298 = sand.u32 %s38, 1
        %s299 = scalar_lea.sflag [#allocation3], %s298
        %s300 = sand.u32 %s38, 1
        %s301 = smul.addr %s300, 16
        %s302 = scalar_lea.vmem [#allocation2], %s301
        // Predicated region
        $region45: #{tpu_custom_call.1} parent=43 // pred_check
          %p303 = pneg %p51
        $region46: #{tpu_custom_call.1} parent=43 // pred_check_branch
          %305 = sbr.rel (%p303) target = $region48
        $region47: #{tpu_custom_call.1} parent=43 // pred_region
          %306 = dma.done %s299, 256
        $region48: #{tpu_custom_call.1} parent=43 // pred_fallthru
          _
        // Predicated region
        $region49: #{tpu_custom_call.1} parent=43 // pred_check
          %p307 = pneg %p93
        $region50: #{tpu_custom_call.1} parent=43 // pred_check_branch
          %309 = sbr.rel (%p307) target = $region52
        $region51: #{tpu_custom_call.1} parent=43 // pred_region
          %310 = dma.done [#allocation6], 13312
        $region52: #{tpu_custom_call.1} parent=43 // pred_fallthru
          _
        // Predicated region
        $region53: #{tpu_custom_call.1} parent=43 // pred_check
          %p311 = pneg %p114
        $region54: #{tpu_custom_call.1} parent=43 // pred_check_branch
          %313 = sbr.rel (%p311) target = $region56
        $region55: #{tpu_custom_call.1} parent=43 // pred_region
          %314 = dma.done [#allocation6], 208
        $region56: #{tpu_custom_call.1} parent=43 // pred_fallthru
          _
        // Predicated region
        $region57: #{tpu_custom_call.1} parent=43 // pred_check
          %p315 = pneg %p135
        $region58: #{tpu_custom_call.1} parent=43 // pred_check_branch
          %317 = sbr.rel (%p315) target = $region60
        $region59: #{tpu_custom_call.1} parent=43 // pred_region
          %318 = dma.done [#allocation9], 13312
        $region60: #{tpu_custom_call.1} parent=43 // pred_fallthru
          _
        %s319 = sand.u32 %s38, 1
        %s320 = scalar_lea.sflag [#allocation3], %s319
        %s321 = sand.u32 %s38, 1
        %s322 = smul.addr %s321, 16
        %s323 = scalar_lea.vmem [#allocation2], %s322
        %p324 = pneg %p51
        %p325 = pneg %p48
        %p326 = pneg %p72
        %p327 = pneg %p69
        %p328 = pneg %p93
        %p329 = pneg %p90
        %p330 = pneg %p114
        %p331 = pneg %p111
        %p332 = pneg %p135
        %p333 = pneg %p132
        %p334 = pneg %p156
        %p335 = pneg %p153
        %p336 = pneg %p182
        %p337 = pneg %p179
        %s338 = sand.u32 %s169, 1
        %s339 = scalar_lea.sflag [#allocation4], %s338
        %s340 = sand.u32 %s169, 1
        %s341 = smul.addr %s340, 16
        %s342 = scalar_lea.vmem [#allocation10], %s341
        %p343 = pneg %p208
        %p344 = pneg %p205
        %s345 = sand.u32 %s195, 1
        %s346 = scalar_lea.sflag [#allocation12], %s345
        %s347 = sand.u32 %s195, 1
        %s348 = smul.addr %s347, 16
        %s349 = scalar_lea.vmem [#allocation11], %s348
        %s350 = smul.u32 2, %s30
        %s351 = smul.u32 2, %s30
        %s352 = smul.u32 2, %s30
        %v354 = vld [vmem:[%s1] sm:$0x1]
        %v355 = vunpack.c.l.bf16 %v354
        %v356 = vld [vmem:[%s302] sm:$0xff]
        %v357 = vld [vmem:[%s302 + $0x8] sm:$0xff]
        %v358 = vlaneseq
        %v359 = vshrl.u32 %v358, 7
        %v360 = vsub.s32 0, %v359
        %v361 = vrot.slane %v355, %v360
        %v362 = vmul.f32 %v356, %v361
        %v363 = vmul.f32 %v357, %v361
        %v364 = vpack.c.bf16 %v363, %v362
        %v365 = vld [vmem:[#allocation5] sm:$0xff]
        %v366 = vld [vmem:[#allocation5 + $0x8] sm:$0xff]
        %v367 = vld [vmem:[#allocation5 + $0x10] sm:$0xff]
        %v368 = vld [vmem:[#allocation5 + $0x18] sm:$0xff]
        %v369 = vld [vmem:[#allocation5 + $0x20] sm:$0xff]
        %v370 = vld [vmem:[#allocation5 + $0x28] sm:$0xff]
        %v371 = vld [vmem:[#allocation5 + $0x30] sm:$0xf]
        %v372 = vld [vmem:[#allocation5 + $0x34] sm:$0xff]
        %v373 = vld [vmem:[#allocation5 + $0x3c] sm:$0xff]
        %v374 = vld [vmem:[#allocation5 + $0x44] sm:$0xff]
        %v375 = vld [vmem:[#allocation5 + $0x4c] sm:$0xff]
        %v376 = vld [vmem:[#allocation5 + $0x54] sm:$0xff]
        %v377 = vld [vmem:[#allocation5 + $0x5c] sm:$0xff]
        %v378 = vld [vmem:[#allocation5 + $0x64] sm:$0xf]
        %v379 = vld [vmem:[#allocation5 + $0x68] sm:$0xff]
        %v380 = vld [vmem:[#allocation5 + $0x70] sm:$0xff]
        %v381 = vld [vmem:[#allocation5 + $0x78] sm:$0xff]
        %v382 = vld [vmem:[#allocation5 + $0x80] sm:$0xff]
        %v383 = vld [vmem:[#allocation5 + $0x88] sm:$0xff]
        %v384 = vld [vmem:[#allocation5 + $0x90] sm:$0xff]
        %v385 = vld [vmem:[#allocation5 + $0x98] sm:$0xf]
        %v386 = vld [vmem:[#allocation5 + $0x9c] sm:$0xff]
        %v387 = vld [vmem:[#allocation5 + $0xa4] sm:$0xff]
        %v388 = vld [vmem:[#allocation5 + $0xac] sm:$0xff]
        %v389 = vld [vmem:[#allocation5 + $0xb4] sm:$0xff]
        %v390 = vld [vmem:[#allocation5 + $0xbc] sm:$0xff]
        %v391 = vld [vmem:[#allocation5 + $0xc4] sm:$0xff]
        %v392 = vld [vmem:[#allocation5 + $0xcc] sm:$0xf]
        %v393 = vld [vmem:[#allocation5 + $0xd0] sm:$0xff]
        %v394 = vld [vmem:[#allocation5 + $0xd8] sm:$0xff]
        %v395 = vld [vmem:[#allocation5 + $0xe0] sm:$0xff]
        %v396 = vld [vmem:[#allocation5 + $0xe8] sm:$0xff]
        %v397 = vld [vmem:[#allocation5 + $0xf0] sm:$0xff]
        %v398 = vld [vmem:[#allocation5 + $0xf8] sm:$0xff]
        %v399 = vld [vmem:[#allocation5 + $0x100] sm:$0xf]
        %v400 = vld [vmem:[#allocation5 + $0x104] sm:$0xff]
        %v401 = vld [vmem:[#allocation5 + $0x10c] sm:$0xff]
        %v402 = vld [vmem:[#allocation5 + $0x114] sm:$0xff]
        %v403 = vld [vmem:[#allocation5 + $0x11c] sm:$0xff]
        %v404 = vld [vmem:[#allocation5 + $0x124] sm:$0xff]
        %v405 = vld [vmem:[#allocation5 + $0x12c] sm:$0xff]
        %v406 = vld [vmem:[#allocation5 + $0x134] sm:$0xf]
        %v407 = vld [vmem:[#allocation5 + $0x138] sm:$0xff]
        %v408 = vld [vmem:[#allocation5 + $0x140] sm:$0xff]
        %v409 = vld [vmem:[#allocation5 + $0x148] sm:$0xff]
        %v410 = vld [vmem:[#allocation5 + $0x150] sm:$0xff]
        %v411 = vld [vmem:[#allocation5 + $0x158] sm:$0xff]
        %v412 = vld [vmem:[#allocation5 + $0x160] sm:$0xff]
        %v413 = vld [vmem:[#allocation5 + $0x168] sm:$0xf]
        %v414 = vld [vmem:[#allocation5 + $0x16c] sm:$0xff]
        %v415 = vld [vmem:[#allocation5 + $0x174] sm:$0xff]
        %v416 = vld [vmem:[#allocation5 + $0x17c] sm:$0xff]
        %v417 = vld [vmem:[#allocation5 + $0x184] sm:$0xff]
        %v418 = vld [vmem:[#allocation5 + $0x18c] sm:$0xff]
        %v419 = vld [vmem:[#allocation5 + $0x194] sm:$0xff]
        %v420 = vld [vmem:[#allocation5 + $0x19c] sm:$0xf]
        %v421 = vld [vmem:[#allocation5 + $0x1a0] sm:$0xff]
        %v422 = vld [vmem:[#allocation5 + $0x1a8] sm:$0xff]
        %v423 = vld [vmem:[#allocation5 + $0x1b0] sm:$0xff]
        %v424 = vld [vmem:[#allocation5 + $0x1b8] sm:$0xff]
        %v425 = vld [vmem:[#allocation5 + $0x1c0] sm:$0xff]
        %v426 = vld [vmem:[#allocation5 + $0x1c8] sm:$0xff]
        %v427 = vld [vmem:[#allocation5 + $0x1d0] sm:$0xf]
        %v428 = vld [vmem:[#allocation5 + $0x1d4] sm:$0xff]
        %v429 = vld [vmem:[#allocation5 + $0x1dc] sm:$0xff]
        %v430 = vld [vmem:[#allocation5 + $0x1e4] sm:$0xff]
        %v431 = vld [vmem:[#allocation5 + $0x1ec] sm:$0xff]
        %v432 = vld [vmem:[#allocation5 + $0x1f4] sm:$0xff]
        %v433 = vld [vmem:[#allocation5 + $0x1fc] sm:$0xff]
        %v434 = vld [vmem:[#allocation5 + $0x204] sm:$0xf]
        %v435 = vld [vmem:[#allocation5 + $0x208] sm:$0xff]
        %v436 = vld [vmem:[#allocation5 + $0x210] sm:$0xff]
        %v437 = vld [vmem:[#allocation5 + $0x218] sm:$0xff]
        %v438 = vld [vmem:[#allocation5 + $0x220] sm:$0xff]
        %v439 = vld [vmem:[#allocation5 + $0x228] sm:$0xff]
        %v440 = vld [vmem:[#allocation5 + $0x230] sm:$0xff]
        %v441 = vld [vmem:[#allocation5 + $0x238] sm:$0xf]
        %v442 = vld [vmem:[#allocation5 + $0x23c] sm:$0xff]
        %v443 = vld [vmem:[#allocation5 + $0x244] sm:$0xff]
        %v444 = vld [vmem:[#allocation5 + $0x24c] sm:$0xff]
        %v445 = vld [vmem:[#allocation5 + $0x254] sm:$0xff]
        %v446 = vld [vmem:[#allocation5 + $0x25c] sm:$0xff]
        %v447 = vld [vmem:[#allocation5 + $0x264] sm:$0xff]
        %v448 = vld [vmem:[#allocation5 + $0x26c] sm:$0xf]
        %v449 = vld [vmem:[#allocation5 + $0x270] sm:$0xff]
        %v450 = vld [vmem:[#allocation5 + $0x278] sm:$0xff]
        %v451 = vld [vmem:[#allocation5 + $0x280] sm:$0xff]
        %v452 = vld [vmem:[#allocation5 + $0x288] sm:$0xff]
        %v453 = vld [vmem:[#allocation5 + $0x290] sm:$0xff]
        %v454 = vld [vmem:[#allocation5 + $0x298] sm:$0xff]
        %v455 = vld [vmem:[#allocation5 + $0x2a0] sm:$0xf]
        %v456 = vld [vmem:[#allocation5 + $0x2a4] sm:$0xff]
        %v457 = vld [vmem:[#allocation5 + $0x2ac] sm:$0xff]
        %v458 = vld [vmem:[#allocation5 + $0x2b4] sm:$0xff]
        %v459 = vld [vmem:[#allocation5 + $0x2bc] sm:$0xff]
        %v460 = vld [vmem:[#allocation5 + $0x2c4] sm:$0xff]
        %v461 = vld [vmem:[#allocation5 + $0x2cc] sm:$0xff]
        %v462 = vld [vmem:[#allocation5 + $0x2d4] sm:$0xf]
        %v463 = vld [vmem:[#allocation5 + $0x2d8] sm:$0xff]
        %v464 = vld [vmem:[#allocation5 + $0x2e0] sm:$0xff]
        %v465 = vld [vmem:[#allocation5 + $0x2e8] sm:$0xff]
        %v466 = vld [vmem:[#allocation5 + $0x2f0] sm:$0xff]
        %v467 = vld [vmem:[#allocation5 + $0x2f8] sm:$0xff]
        %v468 = vld [vmem:[#allocation5 + $0x300] sm:$0xff]
        %v469 = vld [vmem:[#allocation5 + $0x308] sm:$0xf]
        %v470 = vld [vmem:[#allocation5 + $0x30c] sm:$0xff]
        %v471 = vld [vmem:[#allocation5 + $0x314] sm:$0xff]
        %v472 = vld [vmem:[#allocation5 + $0x31c] sm:$0xff]
        %v473 = vld [vmem:[#allocation5 + $0x324] sm:$0xff]
        %v474 = vld [vmem:[#allocation5 + $0x32c] sm:$0xff]
        %v475 = vld [vmem:[#allocation5 + $0x334] sm:$0xff]
        %v476 = vld [vmem:[#allocation5 + $0x33c] sm:$0xf]
        %v477 = vld [vmem:[#allocation7] sm:$0xff]
        %v478 = vld [vmem:[#allocation7 + $0x8] sm:$0x1f]
        %v481 = vlaneseq
        %v482 = vshrl.u32 %v481, 7
        %v483 = vsub.s32 0, %v482
        %v484 = vrot.slane %v477, %v483
        %v485 = vlaneseq
        %v486 = vshrl.u32 %v485, 7
        %v487 = vsub.s32 1, %v486
        %v488 = vrot.slane %v477, %v487
        %v489 = vlaneseq
        %v490 = vshrl.u32 %v489, 7
        %v491 = vsub.s32 2, %v490
        %v492 = vrot.slane %v477, %v491
        %v493 = vlaneseq
        %v494 = vshrl.u32 %v493, 7
        %v495 = vsub.s32 3, %v494
        %v496 = vrot.slane %v477, %v495
        %v497 = vlaneseq
        %v498 = vshrl.u32 %v497, 7
        %v499 = vsub.s32 4, %v498
        %v500 = vrot.slane %v477, %v499
        %v501 = vlaneseq
        %v502 = vshrl.u32 %v501, 7
        %v503 = vsub.s32 5, %v502
        %v504 = vrot.slane %v477, %v503
        %v505 = vlaneseq
        %v506 = vshrl.u32 %v505, 7
        %v507 = vsub.s32 6, %v506
        %v508 = vrot.slane %v477, %v507
        %v509 = vlaneseq
        %v510 = vshrl.u32 %v509, 7
        %v511 = vsub.s32 7, %v510
        %v512 = vrot.slane %v477, %v511
        %v513 = vlaneseq
        %v514 = vshrl.u32 %v513, 7
        %v515 = vsub.s32 0, %v514
        %v516 = vrot.slane %v478, %v515
        %v517 = vlaneseq
        %v518 = vshrl.u32 %v517, 7
        %v519 = vsub.s32 1, %v518
        %v520 = vrot.slane %v478, %v519
        %v521 = vlaneseq
        %v522 = vshrl.u32 %v521, 7
        %v523 = vsub.s32 2, %v522
        %v524 = vrot.slane %v478, %v523
        %v525 = vlaneseq
        %v526 = vshrl.u32 %v525, 7
        %v527 = vsub.s32 3, %v526
        %v528 = vrot.slane %v478, %v527
        %v529 = vlaneseq
        %v530 = vshrl.u32 %v529, 7
        %v531 = vsub.s32 4, %v530
        %v532 = vrot.slane %v478, %v531
        %v658 = vunpack.c.l.b16 %v365
        %v659 = vunpack.c.h.b16 %v365
        %v660 = vunpack.c.l.b16 %v366
        %v661 = vunpack.c.h.b16 %v366
        %v662 = vunpack.c.l.b16 %v367
        %v663 = vunpack.c.h.b16 %v367
        %v664 = vunpack.c.l.b16 %v368
        %v665 = vunpack.c.h.b16 %v368
        %v666 = vunpack.c.l.b16 %v369
        %v667 = vunpack.c.h.b16 %v369
        %v668 = vunpack.c.l.b16 %v370
        %v669 = vunpack.c.h.b16 %v370
        %v670 = vunpack.c.l.b16 %v371
        %v671 = vunpack.c.l.b16 %v372
        %v672 = vunpack.c.h.b16 %v372
        %v673 = vunpack.c.l.b16 %v373
        %v674 = vunpack.c.h.b16 %v373
        %v675 = vunpack.c.l.b16 %v374
        %v676 = vunpack.c.h.b16 %v374
        %v677 = vunpack.c.l.b16 %v375
        %v678 = vunpack.c.h.b16 %v375
        %v679 = vunpack.c.l.b16 %v376
        %v680 = vunpack.c.h.b16 %v376
        %v681 = vunpack.c.l.b16 %v377
        %v682 = vunpack.c.h.b16 %v377
        %v683 = vunpack.c.l.b16 %v378
        %v684 = vunpack.c.l.b16 %v379
        %v685 = vunpack.c.h.b16 %v379
        %v686 = vunpack.c.l.b16 %v380
        %v687 = vunpack.c.h.b16 %v380
        %v688 = vunpack.c.l.b16 %v381
        %v689 = vunpack.c.h.b16 %v381
        %v690 = vunpack.c.l.b16 %v382
        %v691 = vunpack.c.h.b16 %v382
        %v692 = vunpack.c.l.b16 %v383
        %v693 = vunpack.c.h.b16 %v383
        %v694 = vunpack.c.l.b16 %v384
        %v695 = vunpack.c.h.b16 %v384
        %v696 = vunpack.c.l.b16 %v385
        %v697 = vunpack.c.l.b16 %v386
        %v698 = vunpack.c.h.b16 %v386
        %v699 = vunpack.c.l.b16 %v387
        %v700 = vunpack.c.h.b16 %v387
        %v701 = vunpack.c.l.b16 %v388
        %v702 = vunpack.c.h.b16 %v388
        %v703 = vunpack.c.l.b16 %v389
        %v704 = vunpack.c.h.b16 %v389
        %v705 = vunpack.c.l.b16 %v390
        %v706 = vunpack.c.h.b16 %v390
        %v707 = vunpack.c.l.b16 %v391
        %v708 = vunpack.c.h.b16 %v391
        %v709 = vunpack.c.l.b16 %v392
        %v710 = vunpack.c.l.b16 %v393
        %v711 = vunpack.c.h.b16 %v393
        %v712 = vunpack.c.l.b16 %v394
        %v713 = vunpack.c.h.b16 %v394
        %v714 = vunpack.c.l.b16 %v395
        %v715 = vunpack.c.h.b16 %v395
        %v716 = vunpack.c.l.b16 %v396
        %v717 = vunpack.c.h.b16 %v396
        %v718 = vunpack.c.l.b16 %v397
        %v719 = vunpack.c.h.b16 %v397
        %v720 = vunpack.c.l.b16 %v398
        %v721 = vunpack.c.h.b16 %v398
        %v722 = vunpack.c.l.b16 %v399
        %v723 = vunpack.c.l.b16 %v400
        %v724 = vunpack.c.h.b16 %v400
        %v725 = vunpack.c.l.b16 %v401
        %v726 = vunpack.c.h.b16 %v401
        %v727 = vunpack.c.l.b16 %v402
        %v728 = vunpack.c.h.b16 %v402
        %v729 = vunpack.c.l.b16 %v403
        %v730 = vunpack.c.h.b16 %v403
        %v731 = vunpack.c.l.b16 %v404
        %v732 = vunpack.c.h.b16 %v404
        %v733 = vunpack.c.l.b16 %v405
        %v734 = vunpack.c.h.b16 %v405
        %v735 = vunpack.c.l.b16 %v406
        %v736 = vunpack.c.l.b16 %v407
        %v737 = vunpack.c.h.b16 %v407
        %v738 = vunpack.c.l.b16 %v408
        %v739 = vunpack.c.h.b16 %v408
        %v740 = vunpack.c.l.b16 %v409
        %v741 = vunpack.c.h.b16 %v409
        %v742 = vunpack.c.l.b16 %v410
        %v743 = vunpack.c.h.b16 %v410
        %v744 = vunpack.c.l.b16 %v411
        %v745 = vunpack.c.h.b16 %v411
        %v746 = vunpack.c.l.b16 %v412
        %v747 = vunpack.c.h.b16 %v412
        %v748 = vunpack.c.l.b16 %v413
        %v749 = vunpack.c.l.b16 %v414
        %v750 = vunpack.c.h.b16 %v414
        %v751 = vunpack.c.l.b16 %v415
        %v752 = vunpack.c.h.b16 %v415
        %v753 = vunpack.c.l.b16 %v416
        %v754 = vunpack.c.h.b16 %v416
        %v755 = vunpack.c.l.b16 %v417
        %v756 = vunpack.c.h.b16 %v417
        %v757 = vunpack.c.l.b16 %v418
        %v758 = vunpack.c.h.b16 %v418
        %v759 = vunpack.c.l.b16 %v419
        %v760 = vunpack.c.h.b16 %v419
        %v761 = vunpack.c.l.b16 %v420
        %v762 = vunpack.c.l.b16 %v421
        %v763 = vunpack.c.h.b16 %v421
        %v764 = vunpack.c.l.b16 %v422
        %v765 = vunpack.c.h.b16 %v422
        %v766 = vunpack.c.l.b16 %v423
        %v767 = vunpack.c.h.b16 %v423
        %v768 = vunpack.c.l.b16 %v424
        %v769 = vunpack.c.h.b16 %v424
        %v770 = vunpack.c.l.b16 %v425
        %v771 = vunpack.c.h.b16 %v425
        %v772 = vunpack.c.l.b16 %v426
        %v773 = vunpack.c.h.b16 %v426
        %v774 = vunpack.c.l.b16 %v427
        %v775 = vunpack.c.l.b16 %v428
        %v776 = vunpack.c.h.b16 %v428
        %v777 = vunpack.c.l.b16 %v429
        %v778 = vunpack.c.h.b16 %v429
        %v779 = vunpack.c.l.b16 %v430
        %v780 = vunpack.c.h.b16 %v430
        %v781 = vunpack.c.l.b16 %v431
        %v782 = vunpack.c.h.b16 %v431
        %v783 = vunpack.c.l.b16 %v432
        %v784 = vunpack.c.h.b16 %v432
        %v785 = vunpack.c.l.b16 %v433
        %v786 = vunpack.c.h.b16 %v433
        %v787 = vunpack.c.l.b16 %v434
        %v788 = vunpack.c.l.b16 %v435
        %v789 = vunpack.c.h.b16 %v435
        %v790 = vunpack.c.l.b16 %v436
        %v791 = vunpack.c.h.b16 %v436
        %v792 = vunpack.c.l.b16 %v437
        %v793 = vunpack.c.h.b16 %v437
        %v794 = vunpack.c.l.b16 %v438
        %v795 = vunpack.c.h.b16 %v438
        %v796 = vunpack.c.l.b16 %v439
        %v797 = vunpack.c.h.b16 %v439
        %v798 = vunpack.c.l.b16 %v440
        %v799 = vunpack.c.h.b16 %v440
        %v800 = vunpack.c.l.b16 %v441
        %v801 = vunpack.c.l.b16 %v442
        %v802 = vunpack.c.h.b16 %v442
        %v803 = vunpack.c.l.b16 %v443
        %v804 = vunpack.c.h.b16 %v443
        %v805 = vunpack.c.l.b16 %v444
        %v806 = vunpack.c.h.b16 %v444
        %v807 = vunpack.c.l.b16 %v445
        %v808 = vunpack.c.h.b16 %v445
        %v809 = vunpack.c.l.b16 %v446
        %v810 = vunpack.c.h.b16 %v446
        %v811 = vunpack.c.l.b16 %v447
        %v812 = vunpack.c.h.b16 %v447
        %v813 = vunpack.c.l.b16 %v448
        %v814 = vunpack.c.l.b16 %v449
        %v815 = vunpack.c.h.b16 %v449
        %v816 = vunpack.c.l.b16 %v450
        %v817 = vunpack.c.h.b16 %v450
        %v818 = vunpack.c.l.b16 %v451
        %v819 = vunpack.c.h.b16 %v451
        %v820 = vunpack.c.l.b16 %v452
        %v821 = vunpack.c.h.b16 %v452
        %v822 = vunpack.c.l.b16 %v453
        %v823 = vunpack.c.h.b16 %v453
        %v824 = vunpack.c.l.b16 %v454
        %v825 = vunpack.c.h.b16 %v454
        %v826 = vunpack.c.l.b16 %v455
        %v827 = vunpack.c.l.b16 %v456
        %v828 = vunpack.c.h.b16 %v456
        %v829 = vunpack.c.l.b16 %v457
        %v830 = vunpack.c.h.b16 %v457
        %v831 = vunpack.c.l.b16 %v458
        %v832 = vunpack.c.h.b16 %v458
        %v833 = vunpack.c.l.b16 %v459
        %v834 = vunpack.c.h.b16 %v459
        %v835 = vunpack.c.l.b16 %v460
        %v836 = vunpack.c.h.b16 %v460
        %v837 = vunpack.c.l.b16 %v461
        %v838 = vunpack.c.h.b16 %v461
        %v839 = vunpack.c.l.b16 %v462
        %v840 = vunpack.c.l.b16 %v463
        %v841 = vunpack.c.h.b16 %v463
        %v842 = vunpack.c.l.b16 %v464
        %v843 = vunpack.c.h.b16 %v464
        %v844 = vunpack.c.l.b16 %v465
        %v845 = vunpack.c.h.b16 %v465
        %v846 = vunpack.c.l.b16 %v466
        %v847 = vunpack.c.h.b16 %v466
        %v848 = vunpack.c.l.b16 %v467
        %v849 = vunpack.c.h.b16 %v467
        %v850 = vunpack.c.l.b16 %v468
        %v851 = vunpack.c.h.b16 %v468
        %v852 = vunpack.c.l.b16 %v469
        %v853 = vunpack.c.l.b16 %v470
        %v854 = vunpack.c.h.b16 %v470
        %v855 = vunpack.c.l.b16 %v471
        %v856 = vunpack.c.h.b16 %v471
        %v857 = vunpack.c.l.b16 %v472
        %v858 = vunpack.c.h.b16 %v472
        %v859 = vunpack.c.l.b16 %v473
        %v860 = vunpack.c.h.b16 %v473
        %v861 = vunpack.c.l.b16 %v474
        %v862 = vunpack.c.h.b16 %v474
        %v863 = vunpack.c.l.b16 %v475
        %v864 = vunpack.c.h.b16 %v475
        %v865 = vunpack.c.l.b16 %v476
        %v866 = vpack.c.b16 %v671, %v658
        %v867 = vpack.c.b16 %v672, %v659
        %v868 = vpack.c.b16 %v673, %v660
        %v869 = vpack.c.b16 %v674, %v661
        %v870 = vpack.c.b16 %v675, %v662
        %v871 = vpack.c.b16 %v676, %v663
        %v872 = vpack.c.b16 %v677, %v664
        %v873 = vpack.c.b16 %v678, %v665
        %v874 = vpack.c.b16 %v679, %v666
        %v875 = vpack.c.b16 %v680, %v667
        %v876 = vpack.c.b16 %v681, %v668
        %v877 = vpack.c.b16 %v682, %v669
        %v878 = vpack.c.b16 %v683, %v670
        %v879 = vpack.c.b16 %v697, %v684
        %v880 = vpack.c.b16 %v698, %v685
        %v881 = vpack.c.b16 %v699, %v686
        %v882 = vpack.c.b16 %v700, %v687
        %v883 = vpack.c.b16 %v701, %v688
        %v884 = vpack.c.b16 %v702, %v689
        %v885 = vpack.c.b16 %v703, %v690
        %v886 = vpack.c.b16 %v704, %v691
        %v887 = vpack.c.b16 %v705, %v692
        %v888 = vpack.c.b16 %v706, %v693
        %v889 = vpack.c.b16 %v707, %v694
        %v890 = vpack.c.b16 %v708, %v695
        %v891 = vpack.c.b16 %v709, %v696
        %v892 = vpack.c.b16 %v723, %v710
        %v893 = vpack.c.b16 %v724, %v711
        %v894 = vpack.c.b16 %v725, %v712
        %v895 = vpack.c.b16 %v726, %v713
        %v896 = vpack.c.b16 %v727, %v714
        %v897 = vpack.c.b16 %v728, %v715
        %v898 = vpack.c.b16 %v729, %v716
        %v899 = vpack.c.b16 %v730, %v717
        %v900 = vpack.c.b16 %v731, %v718
        %v901 = vpack.c.b16 %v732, %v719
        %v902 = vpack.c.b16 %v733, %v720
        %v903 = vpack.c.b16 %v734, %v721
        %v904 = vpack.c.b16 %v735, %v722
        %v905 = vpack.c.b16 %v749, %v736
        %v906 = vpack.c.b16 %v750, %v737
        %v907 = vpack.c.b16 %v751, %v738
        %v908 = vpack.c.b16 %v752, %v739
        %v909 = vpack.c.b16 %v753, %v740
        %v910 = vpack.c.b16 %v754, %v741
        %v911 = vpack.c.b16 %v755, %v742
        %v912 = vpack.c.b16 %v756, %v743
        %v913 = vpack.c.b16 %v757, %v744
        %v914 = vpack.c.b16 %v758, %v745
        %v915 = vpack.c.b16 %v759, %v746
        %v916 = vpack.c.b16 %v760, %v747
        %v917 = vpack.c.b16 %v761, %v748
        %v918 = vpack.c.b16 %v775, %v762
        %v919 = vpack.c.b16 %v776, %v763
        %v920 = vpack.c.b16 %v777, %v764
        %v921 = vpack.c.b16 %v778, %v765
        %v922 = vpack.c.b16 %v779, %v766
        %v923 = vpack.c.b16 %v780, %v767
        %v924 = vpack.c.b16 %v781, %v768
        %v925 = vpack.c.b16 %v782, %v769
        %v926 = vpack.c.b16 %v783, %v770
        %v927 = vpack.c.b16 %v784, %v771
        %v928 = vpack.c.b16 %v785, %v772
        %v929 = vpack.c.b16 %v786, %v773
        %v930 = vpack.c.b16 %v787, %v774
        %v931 = vpack.c.b16 %v801, %v788
        %v932 = vpack.c.b16 %v802, %v789
        %v933 = vpack.c.b16 %v803, %v790
        %v934 = vpack.c.b16 %v804, %v791
        %v935 = vpack.c.b16 %v805, %v792
        %v936 = vpack.c.b16 %v806, %v793
        %v937 = vpack.c.b16 %v807, %v794
        %v938 = vpack.c.b16 %v808, %v795
        %v939 = vpack.c.b16 %v809, %v796
        %v940 = vpack.c.b16 %v810, %v797
        %v941 = vpack.c.b16 %v811, %v798
        %v942 = vpack.c.b16 %v812, %v799
        %v943 = vpack.c.b16 %v813, %v800
        %v944 = vpack.c.b16 %v827, %v814
        %v945 = vpack.c.b16 %v828, %v815
        %v946 = vpack.c.b16 %v829, %v816
        %v947 = vpack.c.b16 %v830, %v817
        %v948 = vpack.c.b16 %v831, %v818
        %v949 = vpack.c.b16 %v832, %v819
        %v950 = vpack.c.b16 %v833, %v820
        %v951 = vpack.c.b16 %v834, %v821
        %v952 = vpack.c.b16 %v835, %v822
        %v953 = vpack.c.b16 %v836, %v823
        %v954 = vpack.c.b16 %v837, %v824
        %v955 = vpack.c.b16 %v838, %v825
        %v956 = vpack.c.b16 %v839, %v826
        %v957 = vpack.c.b16 %v853, %v840
        %v958 = vpack.c.b16 %v854, %v841
        %v959 = vpack.c.b16 %v855, %v842
        %v960 = vpack.c.b16 %v856, %v843
        %v961 = vpack.c.b16 %v857, %v844
        %v962 = vpack.c.b16 %v858, %v845
        %v963 = vpack.c.b16 %v859, %v846
        %v964 = vpack.c.b16 %v860, %v847
        %v965 = vpack.c.b16 %v861, %v848
        %v966 = vpack.c.b16 %v862, %v849
        %v967 = vpack.c.b16 %v863, %v850
        %v968 = vpack.c.b16 %v864, %v851
        %v969 = vpack.c.b16 %v865, %v852
        %1074 = vmatprep.subr.bf16.mxu0 %v867
        %1075 = vmatpush1.bf16.msra.mxu0 %v866
        %1076 = vmatprep.subr.bf16.mxu0 %v880
        %1077 = vmatpush1.bf16.msra.mxu0 %v879
        %1078 = vmatprep.subr.bf16.mxu0 %v893
        %1079 = vmatpush1.bf16.msra.mxu0 %v892
        %1080 = vmatprep.subr.bf16.mxu0 %v906
        %1081 = vmatpush1.bf16.msra.mxu0 %v905
        %1082 = vmatprep.subr.bf16.mxu0 %v919
        %1083 = vmatpush1.bf16.msra.mxu0 %v918
        %1084 = vmatprep.subr.bf16.mxu0 %v932
        %1085 = vmatpush1.bf16.msra.mxu0 %v931
        %1086 = vmatprep.subr.bf16.mxu0 %v945
        %1087 = vmatpush1.bf16.msra.mxu0 %v944
        %1088 = vmatprep.subr.bf16.mxu0 %v958
        %1089 = vmatpush1.bf16.msra.mxu0 %v957
        %1090 = vmatprep.subr.bf16.mxu0 0
        %1091 = vmatpush1.bf16.msra.mxu0 0
        %1092 = vmatprep.subr.bf16.mxu0 0
        %1093 = vmatpush1.bf16.msra.mxu0 0
        %1094 = vmatprep.subr.bf16.mxu0 0
        %1095 = vmatpush1.bf16.msra.mxu0 0
        %1096 = vmatprep.subr.bf16.mxu0 0
        %1097 = vmatpush1.bf16.msra.mxu0 0
        %1098 = vmatprep.subr.bf16.mxu0 0
        %1099 = vmatpush1.bf16.msra.mxu0 0
        %1100 = vmatprep.subr.bf16.mxu0 0
        %1101 = vmatpush1.bf16.msra.mxu0 0
        %1102 = vmatprep.subr.bf16.mxu0 0
        %1103 = vmatpush1.bf16.msra.mxu0 0
        %1104 = vmatprep.subr.bf16.mxu0 0
        %1105 = vmatpush1.bf16.msra.mxu0 0
        %1106 = vmatprep.mubr.bf16.mxu0 0
        %1107 = vmatmul.mubr.bf16.gmra.mrb[0].mxu0 %v364
        %v1108 = vpop.f32.mrb[0].mxu0
        %v1109 = vadd.f32 %v484, %v1108
        %v1110 = vpop.f32.mrb[0].mxu0
        %v1111 = vadd.f32 %v488, %v1110
        %v1112 = vpop.f32.mrb[0].mxu0
        %v1113 = vadd.f32 %v484, %v1112
        %v1114 = vpop.f32.mrb[0].mxu0
        %v1115 = vadd.f32 %v488, %v1114
        %1116 = vdwg.mxu0
        %1117 = vmatprep.subr.bf16.mxu0 %v869
        %1118 = vmatpush1.bf16.msra.mxu0 %v868
        %1119 = vmatprep.subr.bf16.mxu0 %v882
        %1120 = vmatpush1.bf16.msra.mxu0 %v881
        %1121 = vmatprep.subr.bf16.mxu0 %v895
        %1122 = vmatpush1.bf16.msra.mxu0 %v894
        %1123 = vmatprep.subr.bf16.mxu0 %v908
        %1124 = vmatpush1.bf16.msra.mxu0 %v907
        %1125 = vmatprep.subr.bf16.mxu0 %v921
        %1126 = vmatpush1.bf16.msra.mxu0 %v920
        %1127 = vmatprep.subr.bf16.mxu0 %v934
        %1128 = vmatpush1.bf16.msra.mxu0 %v933
        %1129 = vmatprep.subr.bf16.mxu0 %v947
        %1130 = vmatpush1.bf16.msra.mxu0 %v946
        %1131 = vmatprep.subr.bf16.mxu0 %v960
        %1132 = vmatpush1.bf16.msra.mxu0 %v959
        %1133 = vmatprep.subr.bf16.mxu0 0
        %1134 = vmatpush1.bf16.msra.mxu0 0
        %1135 = vmatprep.subr.bf16.mxu0 0
        %1136 = vmatpush1.bf16.msra.mxu0 0
        %1137 = vmatprep.subr.bf16.mxu0 0
        %1138 = vmatpush1.bf16.msra.mxu0 0
        %1139 = vmatprep.subr.bf16.mxu0 0
        %1140 = vmatpush1.bf16.msra.mxu0 0
        %1141 = vmatprep.subr.bf16.mxu0 0
        %1142 = vmatpush1.bf16.msra.mxu0 0
        %1143 = vmatprep.subr.bf16.mxu0 0
        %1144 = vmatpush1.bf16.msra.mxu0 0
        %1145 = vmatprep.subr.bf16.mxu0 0
        %1146 = vmatpush1.bf16.msra.mxu0 0
        %1147 = vmatprep.subr.bf16.mxu0 0
        %1148 = vmatpush1.bf16.msra.mxu0 0
        %1149 = vmatprep.mubr.bf16.mxu0 0
        %1150 = vmatmul.mubr.bf16.gmra.mrb[0].mxu0 %v364
        %v1151 = vpop.f32.mrb[0].mxu0
        %v1152 = vadd.f32 %v492, %v1151
        %v1153 = vpop.f32.mrb[0].mxu0
        %v1154 = vadd.f32 %v496, %v1153
        %v1155 = vpop.f32.mrb[0].mxu0
        %v1156 = vadd.f32 %v492, %v1155
        %v1157 = vpop.f32.mrb[0].mxu0
        %v1158 = vadd.f32 %v496, %v1157
        %1159 = vdwg.mxu0
        %1160 = vmatprep.subr.bf16.mxu0 %v871
        %1161 = vmatpush1.bf16.msra.mxu0 %v870
        %1162 = vmatprep.subr.bf16.mxu0 %v884
        %1163 = vmatpush1.bf16.msra.mxu0 %v883
        %1164 = vmatprep.subr.bf16.mxu0 %v897
        %1165 = vmatpush1.bf16.msra.mxu0 %v896
        %1166 = vmatprep.subr.bf16.mxu0 %v910
        %1167 = vmatpush1.bf16.msra.mxu0 %v909
        %1168 = vmatprep.subr.bf16.mxu0 %v923
        %1169 = vmatpush1.bf16.msra.mxu0 %v922
        %1170 = vmatprep.subr.bf16.mxu0 %v936
        %1171 = vmatpush1.bf16.msra.mxu0 %v935
        %1172 = vmatprep.subr.bf16.mxu0 %v949
        %1173 = vmatpush1.bf16.msra.mxu0 %v948
        %1174 = vmatprep.subr.bf16.mxu0 %v962
        %1175 = vmatpush1.bf16.msra.mxu0 %v961
        %1176 = vmatprep.subr.bf16.mxu0 0
        %1177 = vmatpush1.bf16.msra.mxu0 0
        %1178 = vmatprep.subr.bf16.mxu0 0
        %1179 = vmatpush1.bf16.msra.mxu0 0
        %1180 = vmatprep.subr.bf16.mxu0 0
        %1181 = vmatpush1.bf16.msra.mxu0 0
        %1182 = vmatprep.subr.bf16.mxu0 0
        %1183 = vmatpush1.bf16.msra.mxu0 0
        %1184 = vmatprep.subr.bf16.mxu0 0
        %1185 = vmatpush1.bf16.msra.mxu0 0
        %1186 = vmatprep.subr.bf16.mxu0 0
        %1187 = vmatpush1.bf16.msra.mxu0 0
        %1188 = vmatprep.subr.bf16.mxu0 0
        %1189 = vmatpush1.bf16.msra.mxu0 0
        %1190 = vmatprep.subr.bf16.mxu0 0
        %1191 = vmatpush1.bf16.msra.mxu0 0
        %1192 = vmatprep.mubr.bf16.mxu0 0
        %1193 = vmatmul.mubr.bf16.gmra.mrb[0].mxu0 %v364
        %v1194 = vpop.f32.mrb[0].mxu0
        %v1195 = vadd.f32 %v500, %v1194
        %v1196 = vpop.f32.mrb[0].mxu0
        %v1197 = vadd.f32 %v504, %v1196
        %v1198 = vpop.f32.mrb[0].mxu0
        %v1199 = vadd.f32 %v500, %v1198
        %v1200 = vpop.f32.mrb[0].mxu0
        %v1201 = vadd.f32 %v504, %v1200
        %1202 = vdwg.mxu0
        %1203 = vmatprep.subr.bf16.mxu0 %v873
        %1204 = vmatpush1.bf16.msra.mxu0 %v872
        %1205 = vmatprep.subr.bf16.mxu0 %v886
        %1206 = vmatpush1.bf16.msra.mxu0 %v885
        %1207 = vmatprep.subr.bf16.mxu0 %v899
        %1208 = vmatpush1.bf16.msra.mxu0 %v898
        %1209 = vmatprep.subr.bf16.mxu0 %v912
        %1210 = vmatpush1.bf16.msra.mxu0 %v911
        %1211 = vmatprep.subr.bf16.mxu0 %v925
        %1212 = vmatpush1.bf16.msra.mxu0 %v924
        %1213 = vmatprep.subr.bf16.mxu0 %v938
        %1214 = vmatpush1.bf16.msra.mxu0 %v937
        %1215 = vmatprep.subr.bf16.mxu0 %v951
        %1216 = vmatpush1.bf16.msra.mxu0 %v950
        %1217 = vmatprep.subr.bf16.mxu0 %v964
        %1218 = vmatpush1.bf16.msra.mxu0 %v963
        %1219 = vmatprep.subr.bf16.mxu0 0
        %1220 = vmatpush1.bf16.msra.mxu0 0
        %1221 = vmatprep.subr.bf16.mxu0 0
        %1222 = vmatpush1.bf16.msra.mxu0 0
        %1223 = vmatprep.subr.bf16.mxu0 0
        %1224 = vmatpush1.bf16.msra.mxu0 0
        %1225 = vmatprep.subr.bf16.mxu0 0
        %1226 = vmatpush1.bf16.msra.mxu0 0
        %1227 = vmatprep.subr.bf16.mxu0 0
        %1228 = vmatpush1.bf16.msra.mxu0 0
        %1229 = vmatprep.subr.bf16.mxu0 0
        %1230 = vmatpush1.bf16.msra.mxu0 0
        %1231 = vmatprep.subr.bf16.mxu0 0
        %1232 = vmatpush1.bf16.msra.mxu0 0
        %1233 = vmatprep.subr.bf16.mxu0 0
        %1234 = vmatpush1.bf16.msra.mxu0 0
        %1235 = vmatprep.mubr.bf16.mxu0 0
        %1236 = vmatmul.mubr.bf16.gmra.mrb[0].mxu0 %v364
        %v1237 = vpop.f32.mrb[0].mxu0
        %v1238 = vadd.f32 %v508, %v1237
        %v1239 = vpop.f32.mrb[0].mxu0
        %v1240 = vadd.f32 %v512, %v1239
        %v1241 = vpop.f32.mrb[0].mxu0
        %v1242 = vadd.f32 %v508, %v1241
        %v1243 = vpop.f32.mrb[0].mxu0
        %v1244 = vadd.f32 %v512, %v1243
        %1245 = vdwg.mxu0
        %1246 = vmatprep.subr.bf16.mxu0 %v875
        %1247 = vmatpush1.bf16.msra.mxu0 %v874
        %1248 = vmatprep.subr.bf16.mxu0 %v888
        %1249 = vmatpush1.bf16.msra.mxu0 %v887
        %1250 = vmatprep.subr.bf16.mxu0 %v901
        %1251 = vmatpush1.bf16.msra.mxu0 %v900
        %1252 = vmatprep.subr.bf16.mxu0 %v914
        %1253 = vmatpush1.bf16.msra.mxu0 %v913
        %1254 = vmatprep.subr.bf16.mxu0 %v927
        %1255 = vmatpush1.bf16.msra.mxu0 %v926
        %1256 = vmatprep.subr.bf16.mxu0 %v940
        %1257 = vmatpush1.bf16.msra.mxu0 %v939
        %1258 = vmatprep.subr.bf16.mxu0 %v953
        %1259 = vmatpush1.bf16.msra.mxu0 %v952
        %1260 = vmatprep.subr.bf16.mxu0 %v966
        %1261 = vmatpush1.bf16.msra.mxu0 %v965
        %1262 = vmatprep.subr.bf16.mxu0 0
        %1263 = vmatpush1.bf16.msra.mxu0 0
        %1264 = vmatprep.subr.bf16.mxu0 0
        %1265 = vmatpush1.bf16.msra.mxu0 0
        %1266 = vmatprep.subr.bf16.mxu0 0
        %1267 = vmatpush1.bf16.msra.mxu0 0
        %1268 = vmatprep.subr.bf16.mxu0 0
        %1269 = vmatpush1.bf16.msra.mxu0 0
        %1270 = vmatprep.subr.bf16.mxu0 0
        %1271 = vmatpush1.bf16.msra.mxu0 0
        %1272 = vmatprep.subr.bf16.mxu0 0
        %1273 = vmatpush1.bf16.msra.mxu0 0
        %1274 = vmatprep.subr.bf16.mxu0 0
        %1275 = vmatpush1.bf16.msra.mxu0 0
        %1276 = vmatprep.subr.bf16.mxu0 0
        %1277 = vmatpush1.bf16.msra.mxu0 0
        %1278 = vmatprep.mubr.bf16.mxu0 0
        %1279 = vmatmul.mubr.bf16.gmra.mrb[0].mxu0 %v364
        %v1280 = vpop.f32.mrb[0].mxu0
        %v1281 = vadd.f32 %v516, %v1280
        %v1282 = vpop.f32.mrb[0].mxu0
        %v1283 = vadd.f32 %v520, %v1282
        %v1284 = vpop.f32.mrb[0].mxu0
        %v1285 = vadd.f32 %v516, %v1284
        %v1286 = vpop.f32.mrb[0].mxu0
        %v1287 = vadd.f32 %v520, %v1286
        %1288 = vdwg.mxu0
        %1289 = vmatprep.subr.bf16.mxu0 %v877
        %1290 = vmatpush1.bf16.msra.mxu0 %v876
        %1291 = vmatprep.subr.bf16.mxu0 %v890
        %1292 = vmatpush1.bf16.msra.mxu0 %v889
        %1293 = vmatprep.subr.bf16.mxu0 %v903
        %1294 = vmatpush1.bf16.msra.mxu0 %v902
        %1295 = vmatprep.subr.bf16.mxu0 %v916
        %1296 = vmatpush1.bf16.msra.mxu0 %v915
        %1297 = vmatprep.subr.bf16.mxu0 %v929
        %1298 = vmatpush1.bf16.msra.mxu0 %v928
        %1299 = vmatprep.subr.bf16.mxu0 %v942
        %1300 = vmatpush1.bf16.msra.mxu0 %v941
        %1301 = vmatprep.subr.bf16.mxu0 %v955
        %1302 = vmatpush1.bf16.msra.mxu0 %v954
        %1303 = vmatprep.subr.bf16.mxu0 %v968
        %1304 = vmatpush1.bf16.msra.mxu0 %v967
        %1305 = vmatprep.subr.bf16.mxu0 0
        %1306 = vmatpush1.bf16.msra.mxu0 0
        %1307 = vmatprep.subr.bf16.mxu0 0
        %1308 = vmatpush1.bf16.msra.mxu0 0
        %1309 = vmatprep.subr.bf16.mxu0 0
        %1310 = vmatpush1.bf16.msra.mxu0 0
        %1311 = vmatprep.subr.bf16.mxu0 0
        %1312 = vmatpush1.bf16.msra.mxu0 0
        %1313 = vmatprep.subr.bf16.mxu0 0
        %1314 = vmatpush1.bf16.msra.mxu0 0
        %1315 = vmatprep.subr.bf16.mxu0 0
        %1316 = vmatpush1.bf16.msra.mxu0 0
        %1317 = vmatprep.subr.bf16.mxu0 0
        %1318 = vmatpush1.bf16.msra.mxu0 0
        %1319 = vmatprep.subr.bf16.mxu0 0
        %1320 = vmatpush1.bf16.msra.mxu0 0
        %1321 = vmatprep.mubr.bf16.mxu0 0
        %1322 = vmatmul.mubr.bf16.gmra.mrb[0].mxu0 %v364
        %v1323 = vpop.f32.mrb[0].mxu0
        %v1324 = vadd.f32 %v524, %v1323
        %v1325 = vpop.f32.mrb[0].mxu0
        %v1326 = vadd.f32 %v528, %v1325
        %v1327 = vpop.f32.mrb[0].mxu0
        %v1328 = vadd.f32 %v524, %v1327
        %v1329 = vpop.f32.mrb[0].mxu0
        %v1330 = vadd.f32 %v528, %v1329
        %1331 = vdwg.mxu0
        %1332 = vmatprep.subr.bf16.mxu0 0
        %1333 = vmatpush1.bf16.msra.mxu0 %v878
        %1334 = vmatprep.subr.bf16.mxu0 0
        %1335 = vmatpush1.bf16.msra.mxu0 %v891
        %1336 = vmatprep.subr.bf16.mxu0 0
        %1337 = vmatpush1.bf16.msra.mxu0 %v904
        %1338 = vmatprep.subr.bf16.mxu0 0
        %1339 = vmatpush1.bf16.msra.mxu0 %v917
        %1340 = vmatprep.subr.bf16.mxu0 0
        %1341 = vmatpush1.bf16.msra.mxu0 %v930
        %1342 = vmatprep.subr.bf16.mxu0 0
        %1343 = vmatpush1.bf16.msra.mxu0 %v943
        %1344 = vmatprep.subr.bf16.mxu0 0
        %1345 = vmatpush1.bf16.msra.mxu0 %v956
        %1346 = vmatprep.subr.bf16.mxu0 0
        %1347 = vmatpush1.bf16.msra.mxu0 %v969
        %1348 = vmatprep.subr.bf16.mxu0 0
        %1349 = vmatpush1.bf16.msra.mxu0 0
        %1350 = vmatprep.subr.bf16.mxu0 0
        %1351 = vmatpush1.bf16.msra.mxu0 0
        %1352 = vmatprep.subr.bf16.mxu0 0
        %1353 = vmatpush1.bf16.msra.mxu0 0
        %1354 = vmatprep.subr.bf16.mxu0 0
        %1355 = vmatpush1.bf16.msra.mxu0 0
        %1356 = vmatprep.subr.bf16.mxu0 0
        %1357 = vmatpush1.bf16.msra.mxu0 0
        %1358 = vmatprep.subr.bf16.mxu0 0
        %1359 = vmatpush1.bf16.msra.mxu0 0
        %1360 = vmatprep.subr.bf16.mxu0 0
        %1361 = vmatpush1.bf16.msra.mxu0 0
        %1362 = vmatprep.subr.bf16.mxu0 0
        %1363 = vmatpush1.bf16.msra.mxu0 0
        %1364 = vmatprep.mubr.bf16.mxu0 0
        %1365 = vmatmul.mubr.bf16.gmra.mrb[0].mxu0 %v364
        %v1366 = vpop.f32.mrb[0].mxu0
        %v1367 = vadd.f32 %v532, %v1366
        %v1368 = vpop.f32.mrb[0].mxu0
        %v1369 = vpop.f32.mrb[0].mxu0
        %v1370 = vadd.f32 %v532, %v1369
        %v1371 = vpop.f32.mrb[0].mxu0
        %1372 = vdwg.mxu0
        %v1373 = vmax.f32 %v1109, 0.0
        %v1374 = vmax.f32 %v1111, 0.0
        %v1375 = vmax.f32 %v1152, 0.0
        %v1376 = vmax.f32 %v1154, 0.0
        %v1377 = vmax.f32 %v1195, 0.0
        %v1378 = vmax.f32 %v1197, 0.0
        %v1379 = vmax.f32 %v1238, 0.0
        %v1380 = vmax.f32 %v1240, 0.0
        %v1381 = vmax.f32 %v1281, 0.0
        %v1382 = vmax.f32 %v1283, 0.0
        %v1383 = vmax.f32 %v1324, 0.0
        %v1384 = vmax.f32 %v1326, 0.0
        %v1385 = vmax.f32 %v1367, 0.0
        %v1386 = vmax.f32 %v1113, 0.0
        %v1387 = vmax.f32 %v1115, 0.0
        %v1388 = vmax.f32 %v1156, 0.0
        %v1389 = vmax.f32 %v1158, 0.0
        %v1390 = vmax.f32 %v1199, 0.0
        %v1391 = vmax.f32 %v1201, 0.0
        %v1392 = vmax.f32 %v1242, 0.0
        %v1393 = vmax.f32 %v1244, 0.0
        %v1394 = vmax.f32 %v1285, 0.0
        %v1395 = vmax.f32 %v1287, 0.0
        %v1396 = vmax.f32 %v1328, 0.0
        %v1397 = vmax.f32 %v1330, 0.0
        %v1398 = vmax.f32 %v1370, 0.0
        %v1399 = vpack.c.bf16 %v1386, %v1373
        %v1400 = vpack.c.bf16 %v1387, %v1374
        %v1401 = vpack.c.bf16 %v1388, %v1375
        %v1402 = vpack.c.bf16 %v1389, %v1376
        %v1403 = vpack.c.bf16 %v1390, %v1377
        %v1404 = vpack.c.bf16 %v1391, %v1378
        %v1405 = vpack.c.bf16 %v1392, %v1379
        %v1406 = vpack.c.bf16 %v1393, %v1380
        %v1407 = vpack.c.bf16 %v1394, %v1381
        %v1408 = vpack.c.bf16 %v1395, %v1382
        %v1409 = vpack.c.bf16 %v1396, %v1383
        %v1410 = vpack.c.bf16 %v1397, %v1384
        %v1411 = vpack.c.bf16 %v1398, %v1385
        %v1412 = vld [vmem:[#allocation8] sm:$0xf]
        %v1413 = vld [vmem:[#allocation8 + $0x4] sm:$0xf]
        %v1414 = vld [vmem:[#allocation8 + $0x8] sm:$0xf]
        %v1415 = vld [vmem:[#allocation8 + $0xc] sm:$0xf]
        %v1416 = vld [vmem:[#allocation8 + $0x10] sm:$0xf]
        %v1417 = vld [vmem:[#allocation8 + $0x14] sm:$0xf]
        %v1418 = vld [vmem:[#allocation8 + $0x18] sm:$0xf]
        %v1419 = vld [vmem:[#allocation8 + $0x1c] sm:$0xf]
        %v1420 = vld [vmem:[#allocation8 + $0x20] sm:$0xf]
        %v1421 = vld [vmem:[#allocation8 + $0x24] sm:$0xf]
        %v1422 = vld [vmem:[#allocation8 + $0x28] sm:$0xf]
        %v1423 = vld [vmem:[#allocation8 + $0x2c] sm:$0xf]
        %v1424 = vld [vmem:[#allocation8 + $0x30] sm:$0xf]
        %v1425 = vld [vmem:[#allocation8 + $0x34] sm:$0xf]
        %v1426 = vld [vmem:[#allocation8 + $0x38] sm:$0xf]
        %v1427 = vld [vmem:[#allocation8 + $0x3c] sm:$0xf]
        %v1428 = vld [vmem:[#allocation8 + $0x40] sm:$0xf]
        %v1429 = vld [vmem:[#allocation8 + $0x44] sm:$0xf]
        %v1430 = vld [vmem:[#allocation8 + $0x48] sm:$0xf]
        %v1431 = vld [vmem:[#allocation8 + $0x4c] sm:$0xf]
        %v1432 = vld [vmem:[#allocation8 + $0x50] sm:$0xf]
        %v1433 = vld [vmem:[#allocation8 + $0x54] sm:$0xf]
        %v1434 = vld [vmem:[#allocation8 + $0x58] sm:$0xf]
        %v1435 = vld [vmem:[#allocation8 + $0x5c] sm:$0xf]
        %v1436 = vld [vmem:[#allocation8 + $0x60] sm:$0xf]
        %v1437 = vld [vmem:[#allocation8 + $0x64] sm:$0xf]
        %v1438 = vld [vmem:[#allocation8 + $0x68] sm:$0xf]
        %v1439 = vld [vmem:[#allocation8 + $0x6c] sm:$0xf]
        %v1440 = vld [vmem:[#allocation8 + $0x70] sm:$0xf]
        %v1441 = vld [vmem:[#allocation8 + $0x74] sm:$0xf]
        %v1442 = vld [vmem:[#allocation8 + $0x78] sm:$0xf]
        %v1443 = vld [vmem:[#allocation8 + $0x7c] sm:$0xf]
        %v1444 = vld [vmem:[#allocation8 + $0x80] sm:$0xf]
        %v1445 = vld [vmem:[#allocation8 + $0x84] sm:$0xf]
        %v1446 = vld [vmem:[#allocation8 + $0x88] sm:$0xf]
        %v1447 = vld [vmem:[#allocation8 + $0x8c] sm:$0xf]
        %v1448 = vld [vmem:[#allocation8 + $0x90] sm:$0xf]
        %v1449 = vld [vmem:[#allocation8 + $0x94] sm:$0xf]
        %v1450 = vld [vmem:[#allocation8 + $0x98] sm:$0xf]
        %v1451 = vld [vmem:[#allocation8 + $0x9c] sm:$0xf]
        %v1452 = vld [vmem:[#allocation8 + $0xa0] sm:$0xf]
        %v1453 = vld [vmem:[#allocation8 + $0xa4] sm:$0xf]
        %v1454 = vld [vmem:[#allocation8 + $0xa8] sm:$0xf]
        %v1455 = vld [vmem:[#allocation8 + $0xac] sm:$0xf]
        %v1456 = vld [vmem:[#allocation8 + $0xb0] sm:$0xf]
        %v1457 = vld [vmem:[#allocation8 + $0xb4] sm:$0xf]
        %v1458 = vld [vmem:[#allocation8 + $0xb8] sm:$0xf]
        %v1459 = vld [vmem:[#allocation8 + $0xbc] sm:$0xf]
        %v1460 = vld [vmem:[#allocation8 + $0xc0] sm:$0xf]
        %v1461 = vld [vmem:[#allocation8 + $0xc4] sm:$0xf]
        %v1462 = vld [vmem:[#allocation8 + $0xc8] sm:$0xf]
        %v1463 = vld [vmem:[#allocation8 + $0xcc] sm:$0xf]
        %v1464 = vld [vmem:[#allocation8 + $0xd0] sm:$0xf]
        %v1465 = vld [vmem:[#allocation8 + $0xd4] sm:$0xf]
        %v1466 = vld [vmem:[#allocation8 + $0xd8] sm:$0xf]
        %v1467 = vld [vmem:[#allocation8 + $0xdc] sm:$0xf]
        %v1468 = vld [vmem:[#allocation8 + $0xe0] sm:$0xf]
        %v1469 = vld [vmem:[#allocation8 + $0xe4] sm:$0xf]
        %v1470 = vld [vmem:[#allocation8 + $0xe8] sm:$0xf]
        %v1471 = vld [vmem:[#allocation8 + $0xec] sm:$0xf]
        %v1472 = vld [vmem:[#allocation8 + $0xf0] sm:$0xf]
        %v1473 = vld [vmem:[#allocation8 + $0xf4] sm:$0xf]
        %v1474 = vld [vmem:[#allocation8 + $0xf8] sm:$0xf]
        %v1475 = vld [vmem:[#allocation8 + $0xfc] sm:$0xf]
        %v1476 = vld [vmem:[#allocation8 + $0x100] sm:$0xf]
        %v1477 = vld [vmem:[#allocation8 + $0x104] sm:$0xf]
        %v1478 = vld [vmem:[#allocation8 + $0x108] sm:$0xf]
        %v1479 = vld [vmem:[#allocation8 + $0x10c] sm:$0xf]
        %v1480 = vld [vmem:[#allocation8 + $0x110] sm:$0xf]
        %v1481 = vld [vmem:[#allocation8 + $0x114] sm:$0xf]
        %v1482 = vld [vmem:[#allocation8 + $0x118] sm:$0xf]
        %v1483 = vld [vmem:[#allocation8 + $0x11c] sm:$0xf]
        %v1484 = vld [vmem:[#allocation8 + $0x120] sm:$0xf]
        %v1485 = vld [vmem:[#allocation8 + $0x124] sm:$0xf]
        %v1486 = vld [vmem:[#allocation8 + $0x128] sm:$0xf]
        %v1487 = vld [vmem:[#allocation8 + $0x12c] sm:$0xf]
        %v1488 = vld [vmem:[#allocation8 + $0x130] sm:$0xf]
        %v1489 = vld [vmem:[#allocation8 + $0x134] sm:$0xf]
        %v1490 = vld [vmem:[#allocation8 + $0x138] sm:$0xf]
        %v1491 = vld [vmem:[#allocation8 + $0x13c] sm:$0xf]
        %v1492 = vld [vmem:[#allocation8 + $0x140] sm:$0xf]
        %v1493 = vld [vmem:[#allocation8 + $0x144] sm:$0xf]
        %v1494 = vld [vmem:[#allocation8 + $0x148] sm:$0xf]
        %v1495 = vld [vmem:[#allocation8 + $0x14c] sm:$0xf]
        %v1496 = vld [vmem:[#allocation8 + $0x150] sm:$0xf]
        %v1497 = vld [vmem:[#allocation8 + $0x154] sm:$0xf]
        %v1498 = vld [vmem:[#allocation8 + $0x158] sm:$0xf]
        %v1499 = vld [vmem:[#allocation8 + $0x15c] sm:$0xf]
        %v1500 = vld [vmem:[#allocation8 + $0x160] sm:$0xf]
        %v1501 = vld [vmem:[#allocation8 + $0x164] sm:$0xf]
        %v1502 = vld [vmem:[#allocation8 + $0x168] sm:$0xf]
        %v1503 = vld [vmem:[#allocation8 + $0x16c] sm:$0xf]
        %v1504 = vld [vmem:[#allocation8 + $0x170] sm:$0xf]
        %v1505 = vld [vmem:[#allocation8 + $0x174] sm:$0xf]
        %v1506 = vld [vmem:[#allocation8 + $0x178] sm:$0xf]
        %v1507 = vld [vmem:[#allocation8 + $0x17c] sm:$0xf]
        %v1508 = vld [vmem:[#allocation8 + $0x180] sm:$0xf]
        %v1509 = vld [vmem:[#allocation8 + $0x184] sm:$0xf]
        %v1510 = vld [vmem:[#allocation8 + $0x188] sm:$0xf]
        %v1511 = vld [vmem:[#allocation8 + $0x18c] sm:$0xf]
        %v1512 = vld [vmem:[#allocation8 + $0x190] sm:$0xf]
        %v1513 = vld [vmem:[#allocation8 + $0x194] sm:$0xf]
        %v1514 = vld [vmem:[#allocation8 + $0x198] sm:$0xf]
        %v1515 = vld [vmem:[#allocation8 + $0x19c] sm:$0xf]
        %v1516 = vld [vmem:[#allocation8 + $0x1a0] sm:$0xf]
        %v1517 = vld [vmem:[#allocation8 + $0x1a4] sm:$0xf]
        %v1518 = vld [vmem:[#allocation8 + $0x1a8] sm:$0xf]
        %v1519 = vld [vmem:[#allocation8 + $0x1ac] sm:$0xf]
        %v1520 = vld [vmem:[#allocation8 + $0x1b0] sm:$0xf]
        %v1521 = vld [vmem:[#allocation8 + $0x1b4] sm:$0xf]
        %v1522 = vld [vmem:[#allocation8 + $0x1b8] sm:$0xf]
        %v1523 = vld [vmem:[#allocation8 + $0x1bc] sm:$0xf]
        %v1524 = vld [vmem:[#allocation8 + $0x1c0] sm:$0xf]
        %v1525 = vld [vmem:[#allocation8 + $0x1c4] sm:$0xf]
        %v1526 = vld [vmem:[#allocation8 + $0x1c8] sm:$0xf]
        %v1527 = vld [vmem:[#allocation8 + $0x1cc] sm:$0xf]
        %v1528 = vld [vmem:[#allocation8 + $0x1d0] sm:$0xf]
        %v1529 = vld [vmem:[#allocation8 + $0x1d4] sm:$0xf]
        %v1530 = vld [vmem:[#allocation8 + $0x1d8] sm:$0xf]
        %v1531 = vld [vmem:[#allocation8 + $0x1dc] sm:$0xf]
        %v1532 = vld [vmem:[#allocation8 + $0x1e0] sm:$0xf]
        %v1533 = vld [vmem:[#allocation8 + $0x1e4] sm:$0xf]
        %v1534 = vld [vmem:[#allocation8 + $0x1e8] sm:$0xf]
        %v1535 = vld [vmem:[#allocation8 + $0x1ec] sm:$0xf]
        %v1536 = vld [vmem:[#allocation8 + $0x1f0] sm:$0xf]
        %v1537 = vld [vmem:[#allocation8 + $0x1f4] sm:$0xf]
        %v1538 = vld [vmem:[#allocation8 + $0x1f8] sm:$0xf]
        %v1539 = vld [vmem:[#allocation8 + $0x1fc] sm:$0xf]
        %v1540 = vld [vmem:[#allocation8 + $0x200] sm:$0xf]
        %v1541 = vld [vmem:[#allocation8 + $0x204] sm:$0xf]
        %v1542 = vld [vmem:[#allocation8 + $0x208] sm:$0xf]
        %v1543 = vld [vmem:[#allocation8 + $0x20c] sm:$0xf]
        %v1544 = vld [vmem:[#allocation8 + $0x210] sm:$0xf]
        %v1545 = vld [vmem:[#allocation8 + $0x214] sm:$0xf]
        %v1546 = vld [vmem:[#allocation8 + $0x218] sm:$0xf]
        %v1547 = vld [vmem:[#allocation8 + $0x21c] sm:$0xf]
        %v1548 = vld [vmem:[#allocation8 + $0x220] sm:$0xf]
        %v1549 = vld [vmem:[#allocation8 + $0x224] sm:$0xf]
        %v1550 = vld [vmem:[#allocation8 + $0x228] sm:$0xf]
        %v1551 = vld [vmem:[#allocation8 + $0x22c] sm:$0xf]
        %v1552 = vld [vmem:[#allocation8 + $0x230] sm:$0xf]
        %v1553 = vld [vmem:[#allocation8 + $0x234] sm:$0xf]
        %v1554 = vld [vmem:[#allocation8 + $0x238] sm:$0xf]
        %v1555 = vld [vmem:[#allocation8 + $0x23c] sm:$0xf]
        %v1556 = vld [vmem:[#allocation8 + $0x240] sm:$0xf]
        %v1557 = vld [vmem:[#allocation8 + $0x244] sm:$0xf]
        %v1558 = vld [vmem:[#allocation8 + $0x248] sm:$0xf]
        %v1559 = vld [vmem:[#allocation8 + $0x24c] sm:$0xf]
        %v1560 = vld [vmem:[#allocation8 + $0x250] sm:$0xf]
        %v1561 = vld [vmem:[#allocation8 + $0x254] sm:$0xf]
        %v1562 = vld [vmem:[#allocation8 + $0x258] sm:$0xf]
        %v1563 = vld [vmem:[#allocation8 + $0x25c] sm:$0xf]
        %v1564 = vld [vmem:[#allocation8 + $0x260] sm:$0xf]
        %v1565 = vld [vmem:[#allocation8 + $0x264] sm:$0xf]
        %v1566 = vld [vmem:[#allocation8 + $0x268] sm:$0xf]
        %v1567 = vld [vmem:[#allocation8 + $0x26c] sm:$0xf]
        %v1568 = vld [vmem:[#allocation8 + $0x270] sm:$0xf]
        %v1569 = vld [vmem:[#allocation8 + $0x274] sm:$0xf]
        %v1570 = vld [vmem:[#allocation8 + $0x278] sm:$0xf]
        %v1571 = vld [vmem:[#allocation8 + $0x27c] sm:$0xf]
        %v1572 = vld [vmem:[#allocation8 + $0x280] sm:$0xf]
        %v1573 = vld [vmem:[#allocation8 + $0x284] sm:$0xf]
        %v1574 = vld [vmem:[#allocation8 + $0x288] sm:$0xf]
        %v1575 = vld [vmem:[#allocation8 + $0x28c] sm:$0xf]
        %v1576 = vld [vmem:[#allocation8 + $0x290] sm:$0xf]
        %v1577 = vld [vmem:[#allocation8 + $0x294] sm:$0xf]
        %v1578 = vld [vmem:[#allocation8 + $0x298] sm:$0xf]
        %v1579 = vld [vmem:[#allocation8 + $0x29c] sm:$0xf]
        %v1580 = vld [vmem:[#allocation8 + $0x2a0] sm:$0xf]
        %v1581 = vld [vmem:[#allocation8 + $0x2a4] sm:$0xf]
        %v1582 = vld [vmem:[#allocation8 + $0x2a8] sm:$0xf]
        %v1583 = vld [vmem:[#allocation8 + $0x2ac] sm:$0xf]
        %v1584 = vld [vmem:[#allocation8 + $0x2b0] sm:$0xf]
        %v1585 = vld [vmem:[#allocation8 + $0x2b4] sm:$0xf]
        %v1586 = vld [vmem:[#allocation8 + $0x2b8] sm:$0xf]
        %v1587 = vld [vmem:[#allocation8 + $0x2bc] sm:$0xf]
        %v1588 = vld [vmem:[#allocation8 + $0x2c0] sm:$0xf]
        %v1589 = vld [vmem:[#allocation8 + $0x2c4] sm:$0xf]
        %v1590 = vld [vmem:[#allocation8 + $0x2c8] sm:$0xf]
        %v1591 = vld [vmem:[#allocation8 + $0x2cc] sm:$0xf]
        %v1592 = vld [vmem:[#allocation8 + $0x2d0] sm:$0xf]
        %v1593 = vld [vmem:[#allocation8 + $0x2d4] sm:$0xf]
        %v1594 = vld [vmem:[#allocation8 + $0x2d8] sm:$0xf]
        %v1595 = vld [vmem:[#allocation8 + $0x2dc] sm:$0xf]
        %v1596 = vld [vmem:[#allocation8 + $0x2e0] sm:$0xf]
        %v1597 = vld [vmem:[#allocation8 + $0x2e4] sm:$0xf]
        %v1598 = vld [vmem:[#allocation8 + $0x2e8] sm:$0xf]
        %v1599 = vld [vmem:[#allocation8 + $0x2ec] sm:$0xf]
        %v1600 = vld [vmem:[#allocation8 + $0x2f0] sm:$0xf]
        %v1601 = vld [vmem:[#allocation8 + $0x2f4] sm:$0xf]
        %v1602 = vld [vmem:[#allocation8 + $0x2f8] sm:$0xf]
        %v1603 = vld [vmem:[#allocation8 + $0x2fc] sm:$0xf]
        %v1604 = vld [vmem:[#allocation8 + $0x300] sm:$0xf]
        %v1605 = vld [vmem:[#allocation8 + $0x304] sm:$0xf]
        %v1606 = vld [vmem:[#allocation8 + $0x308] sm:$0xf]
        %v1607 = vld [vmem:[#allocation8 + $0x30c] sm:$0xf]
        %v1608 = vld [vmem:[#allocation8 + $0x310] sm:$0xf]
        %v1609 = vld [vmem:[#allocation8 + $0x314] sm:$0xf]
        %v1610 = vld [vmem:[#allocation8 + $0x318] sm:$0xf]
        %v1611 = vld [vmem:[#allocation8 + $0x31c] sm:$0xf]
        %v1612 = vld [vmem:[#allocation8 + $0x320] sm:$0xf]
        %v1613 = vld [vmem:[#allocation8 + $0x324] sm:$0xf]
        %v1614 = vld [vmem:[#allocation8 + $0x328] sm:$0xf]
        %v1615 = vld [vmem:[#allocation8 + $0x32c] sm:$0xf]
        %v1616 = vld [vmem:[#allocation8 + $0x330] sm:$0xf]
        %v1617 = vld [vmem:[#allocation8 + $0x334] sm:$0xf]
        %v1618 = vld [vmem:[#allocation8 + $0x338] sm:$0xf]
        %v1619 = vld [vmem:[#allocation8 + $0x33c] sm:$0xf]
        %v1620 = vld [vmem:[%s5] sm:$0x1]
        %v1622 = vlaneseq
        %v1623 = vshrl.u32 %v1622, 7
        %v1624 = vsub.s32 0, %v1623
        %v1625 = vrot.slane %v1620, %v1624
        %v1835 = vunpack.c.l.b16 %v1412
        %v1836 = vunpack.c.l.b16 %v1413
        %v1837 = vunpack.c.l.b16 %v1414
        %v1838 = vunpack.c.l.b16 %v1415
        %v1839 = vunpack.c.l.b16 %v1416
        %v1840 = vunpack.c.l.b16 %v1417
        %v1841 = vunpack.c.l.b16 %v1418
        %v1842 = vunpack.c.l.b16 %v1419
        %v1843 = vunpack.c.l.b16 %v1420
        %v1844 = vunpack.c.l.b16 %v1421
        %v1845 = vunpack.c.l.b16 %v1422
        %v1846 = vunpack.c.l.b16 %v1423
        %v1847 = vunpack.c.l.b16 %v1424
        %v1848 = vunpack.c.l.b16 %v1425
        %v1849 = vunpack.c.l.b16 %v1426
        %v1850 = vunpack.c.l.b16 %v1427
        %v1851 = vunpack.c.l.b16 %v1428
        %v1852 = vunpack.c.l.b16 %v1429
        %v1853 = vunpack.c.l.b16 %v1430
        %v1854 = vunpack.c.l.b16 %v1431
        %v1855 = vunpack.c.l.b16 %v1432
        %v1856 = vunpack.c.l.b16 %v1433
        %v1857 = vunpack.c.l.b16 %v1434
        %v1858 = vunpack.c.l.b16 %v1435
        %v1859 = vunpack.c.l.b16 %v1436
        %v1860 = vunpack.c.l.b16 %v1437
        %v1861 = vunpack.c.l.b16 %v1438
        %v1862 = vunpack.c.l.b16 %v1439
        %v1863 = vunpack.c.l.b16 %v1440
        %v1864 = vunpack.c.l.b16 %v1441
        %v1865 = vunpack.c.l.b16 %v1442
        %v1866 = vunpack.c.l.b16 %v1443
        %v1867 = vunpack.c.l.b16 %v1444
        %v1868 = vunpack.c.l.b16 %v1445
        %v1869 = vunpack.c.l.b16 %v1446
        %v1870 = vunpack.c.l.b16 %v1447
        %v1871 = vunpack.c.l.b16 %v1448
        %v1872 = vunpack.c.l.b16 %v1449
        %v1873 = vunpack.c.l.b16 %v1450
        %v1874 = vunpack.c.l.b16 %v1451
        %v1875 = vunpack.c.l.b16 %v1452
        %v1876 = vunpack.c.l.b16 %v1453
        %v1877 = vunpack.c.l.b16 %v1454
        %v1878 = vunpack.c.l.b16 %v1455
        %v1879 = vunpack.c.l.b16 %v1456
        %v1880 = vunpack.c.l.b16 %v1457
        %v1881 = vunpack.c.l.b16 %v1458
        %v1882 = vunpack.c.l.b16 %v1459
        %v1883 = vunpack.c.l.b16 %v1460
        %v1884 = vunpack.c.l.b16 %v1461
        %v1885 = vunpack.c.l.b16 %v1462
        %v1886 = vunpack.c.l.b16 %v1463
        %v1887 = vunpack.c.l.b16 %v1464
        %v1888 = vunpack.c.l.b16 %v1465
        %v1889 = vunpack.c.l.b16 %v1466
        %v1890 = vunpack.c.l.b16 %v1467
        %v1891 = vunpack.c.l.b16 %v1468
        %v1892 = vunpack.c.l.b16 %v1469
        %v1893 = vunpack.c.l.b16 %v1470
        %v1894 = vunpack.c.l.b16 %v1471
        %v1895 = vunpack.c.l.b16 %v1472
        %v1896 = vunpack.c.l.b16 %v1473
        %v1897 = vunpack.c.l.b16 %v1474
        %v1898 = vunpack.c.l.b16 %v1475
        %v1899 = vunpack.c.l.b16 %v1476
        %v1900 = vunpack.c.l.b16 %v1477
        %v1901 = vunpack.c.l.b16 %v1478
        %v1902 = vunpack.c.l.b16 %v1479
        %v1903 = vunpack.c.l.b16 %v1480
        %v1904 = vunpack.c.l.b16 %v1481
        %v1905 = vunpack.c.l.b16 %v1482
        %v1906 = vunpack.c.l.b16 %v1483
        %v1907 = vunpack.c.l.b16 %v1484
        %v1908 = vunpack.c.l.b16 %v1485
        %v1909 = vunpack.c.l.b16 %v1486
        %v1910 = vunpack.c.l.b16 %v1487
        %v1911 = vunpack.c.l.b16 %v1488
        %v1912 = vunpack.c.l.b16 %v1489
        %v1913 = vunpack.c.l.b16 %v1490
        %v1914 = vunpack.c.l.b16 %v1491
        %v1915 = vunpack.c.l.b16 %v1492
        %v1916 = vunpack.c.l.b16 %v1493
        %v1917 = vunpack.c.l.b16 %v1494
        %v1918 = vunpack.c.l.b16 %v1495
        %v1919 = vunpack.c.l.b16 %v1496
        %v1920 = vunpack.c.l.b16 %v1497
        %v1921 = vunpack.c.l.b16 %v1498
        %v1922 = vunpack.c.l.b16 %v1499
        %v1923 = vunpack.c.l.b16 %v1500
        %v1924 = vunpack.c.l.b16 %v1501
        %v1925 = vunpack.c.l.b16 %v1502
        %v1926 = vunpack.c.l.b16 %v1503
        %v1927 = vunpack.c.l.b16 %v1504
        %v1928 = vunpack.c.l.b16 %v1505
        %v1929 = vunpack.c.l.b16 %v1506
        %v1930 = vunpack.c.l.b16 %v1507
        %v1931 = vunpack.c.l.b16 %v1508
        %v1932 = vunpack.c.l.b16 %v1509
        %v1933 = vunpack.c.l.b16 %v1510
        %v1934 = vunpack.c.l.b16 %v1511
        %v1935 = vunpack.c.l.b16 %v1512
        %v1936 = vunpack.c.l.b16 %v1513
        %v1937 = vunpack.c.l.b16 %v1514
        %v1938 = vunpack.c.l.b16 %v1515
        %v1939 = vunpack.c.l.b16 %v1516
        %v1940 = vunpack.c.l.b16 %v1517
        %v1941 = vunpack.c.l.b16 %v1518
        %v1942 = vunpack.c.l.b16 %v1519
        %v1943 = vunpack.c.l.b16 %v1520
        %v1944 = vunpack.c.l.b16 %v1521
        %v1945 = vunpack.c.l.b16 %v1522
        %v1946 = vunpack.c.l.b16 %v1523
        %v1947 = vunpack.c.l.b16 %v1524
        %v1948 = vunpack.c.l.b16 %v1525
        %v1949 = vunpack.c.l.b16 %v1526
        %v1950 = vunpack.c.l.b16 %v1527
        %v1951 = vunpack.c.l.b16 %v1528
        %v1952 = vunpack.c.l.b16 %v1529
        %v1953 = vunpack.c.l.b16 %v1530
        %v1954 = vunpack.c.l.b16 %v1531
        %v1955 = vunpack.c.l.b16 %v1532
        %v1956 = vunpack.c.l.b16 %v1533
        %v1957 = vunpack.c.l.b16 %v1534
        %v1958 = vunpack.c.l.b16 %v1535
        %v1959 = vunpack.c.l.b16 %v1536
        %v1960 = vunpack.c.l.b16 %v1537
        %v1961 = vunpack.c.l.b16 %v1538
        %v1962 = vunpack.c.l.b16 %v1539
        %v1963 = vunpack.c.l.b16 %v1540
        %v1964 = vunpack.c.l.b16 %v1541
        %v1965 = vunpack.c.l.b16 %v1542
        %v1966 = vunpack.c.l.b16 %v1543
        %v1967 = vunpack.c.l.b16 %v1544
        %v1968 = vunpack.c.l.b16 %v1545
        %v1969 = vunpack.c.l.b16 %v1546
        %v1970 = vunpack.c.l.b16 %v1547
        %v1971 = vunpack.c.l.b16 %v1548
        %v1972 = vunpack.c.l.b16 %v1549
        %v1973 = vunpack.c.l.b16 %v1550
        %v1974 = vunpack.c.l.b16 %v1551
        %v1975 = vunpack.c.l.b16 %v1552
        %v1976 = vunpack.c.l.b16 %v1553
        %v1977 = vunpack.c.l.b16 %v1554
        %v1978 = vunpack.c.l.b16 %v1555
        %v1979 = vunpack.c.l.b16 %v1556
        %v1980 = vunpack.c.l.b16 %v1557
        %v1981 = vunpack.c.l.b16 %v1558
        %v1982 = vunpack.c.l.b16 %v1559
        %v1983 = vunpack.c.l.b16 %v1560
        %v1984 = vunpack.c.l.b16 %v1561
        %v1985 = vunpack.c.l.b16 %v1562
        %v1986 = vunpack.c.l.b16 %v1563
        %v1987 = vunpack.c.l.b16 %v1564
        %v1988 = vunpack.c.l.b16 %v1565
        %v1989 = vunpack.c.l.b16 %v1566
        %v1990 = vunpack.c.l.b16 %v1567
        %v1991 = vunpack.c.l.b16 %v1568
        %v1992 = vunpack.c.l.b16 %v1569
        %v1993 = vunpack.c.l.b16 %v1570
        %v1994 = vunpack.c.l.b16 %v1571
        %v1995 = vunpack.c.l.b16 %v1572
        %v1996 = vunpack.c.l.b16 %v1573
        %v1997 = vunpack.c.l.b16 %v1574
        %v1998 = vunpack.c.l.b16 %v1575
        %v1999 = vunpack.c.l.b16 %v1576
        %v2000 = vunpack.c.l.b16 %v1577
        %v2001 = vunpack.c.l.b16 %v1578
        %v2002 = vunpack.c.l.b16 %v1579
        %v2003 = vunpack.c.l.b16 %v1580
        %v2004 = vunpack.c.l.b16 %v1581
        %v2005 = vunpack.c.l.b16 %v1582
        %v2006 = vunpack.c.l.b16 %v1583
        %v2007 = vunpack.c.l.b16 %v1584
        %v2008 = vunpack.c.l.b16 %v1585
        %v2009 = vunpack.c.l.b16 %v1586
        %v2010 = vunpack.c.l.b16 %v1587
        %v2011 = vunpack.c.l.b16 %v1588
        %v2012 = vunpack.c.l.b16 %v1589
        %v2013 = vunpack.c.l.b16 %v1590
        %v2014 = vunpack.c.l.b16 %v1591
        %v2015 = vunpack.c.l.b16 %v1592
        %v2016 = vunpack.c.l.b16 %v1593
        %v2017 = vunpack.c.l.b16 %v1594
        %v2018 = vunpack.c.l.b16 %v1595
        %v2019 = vunpack.c.l.b16 %v1596
        %v2020 = vunpack.c.l.b16 %v1597
        %v2021 = vunpack.c.l.b16 %v1598
        %v2022 = vunpack.c.l.b16 %v1599
        %v2023 = vunpack.c.l.b16 %v1600
        %v2024 = vunpack.c.l.b16 %v1601
        %v2025 = vunpack.c.l.b16 %v1602
        %v2026 = vunpack.c.l.b16 %v1603
        %v2027 = vunpack.c.l.b16 %v1604
        %v2028 = vunpack.c.l.b16 %v1605
        %v2029 = vunpack.c.l.b16 %v1606
        %v2030 = vunpack.c.l.b16 %v1607
        %v2031 = vunpack.c.l.b16 %v1608
        %v2032 = vunpack.c.l.b16 %v1609
        %v2033 = vunpack.c.l.b16 %v1610
        %v2034 = vunpack.c.l.b16 %v1611
        %v2035 = vunpack.c.l.b16 %v1612
        %v2036 = vunpack.c.l.b16 %v1613
        %v2037 = vunpack.c.l.b16 %v1614
        %v2038 = vunpack.c.l.b16 %v1615
        %v2039 = vunpack.c.l.b16 %v1616
        %v2040 = vunpack.c.l.b16 %v1617
        %v2041 = vunpack.c.l.b16 %v1618
        %v2042 = vunpack.c.l.b16 %v1619
        %v2043 = vpack.c.b16 %v1836, %v1835
        %v2044 = vpack.c.b16 %v1838, %v1837
        %v2045 = vpack.c.b16 %v1840, %v1839
        %v2046 = vpack.c.b16 %v1842, %v1841
        %v2047 = vpack.c.b16 %v1844, %v1843
        %v2048 = vpack.c.b16 %v1846, %v1845
        %v2049 = vpack.c.b16 %v1848, %v1847
        %v2050 = vpack.c.b16 %v1850, %v1849
        %v2051 = vpack.c.b16 %v1852, %v1851
        %v2052 = vpack.c.b16 %v1854, %v1853
        %v2053 = vpack.c.b16 %v1856, %v1855
        %v2054 = vpack.c.b16 %v1858, %v1857
        %v2055 = vpack.c.b16 %v1860, %v1859
        %v2056 = vpack.c.b16 %v1862, %v1861
        %v2057 = vpack.c.b16 %v1864, %v1863
        %v2058 = vpack.c.b16 %v1866, %v1865
        %v2059 = vpack.c.b16 %v1868, %v1867
        %v2060 = vpack.c.b16 %v1870, %v1869
        %v2061 = vpack.c.b16 %v1872, %v1871
        %v2062 = vpack.c.b16 %v1874, %v1873
        %v2063 = vpack.c.b16 %v1876, %v1875
        %v2064 = vpack.c.b16 %v1878, %v1877
        %v2065 = vpack.c.b16 %v1880, %v1879
        %v2066 = vpack.c.b16 %v1882, %v1881
        %v2067 = vpack.c.b16 %v1884, %v1883
        %v2068 = vpack.c.b16 %v1886, %v1885
        %v2069 = vpack.c.b16 %v1888, %v1887
        %v2070 = vpack.c.b16 %v1890, %v1889
        %v2071 = vpack.c.b16 %v1892, %v1891
        %v2072 = vpack.c.b16 %v1894, %v1893
        %v2073 = vpack.c.b16 %v1896, %v1895
        %v2074 = vpack.c.b16 %v1898, %v1897
        %v2075 = vpack.c.b16 %v1900, %v1899
        %v2076 = vpack.c.b16 %v1902, %v1901
        %v2077 = vpack.c.b16 %v1904, %v1903
        %v2078 = vpack.c.b16 %v1906, %v1905
        %v2079 = vpack.c.b16 %v1908, %v1907
        %v2080 = vpack.c.b16 %v1910, %v1909
        %v2081 = vpack.c.b16 %v1912, %v1911
        %v2082 = vpack.c.b16 %v1914, %v1913
        %v2083 = vpack.c.b16 %v1916, %v1915
        %v2084 = vpack.c.b16 %v1918, %v1917
        %v2085 = vpack.c.b16 %v1920, %v1919
        %v2086 = vpack.c.b16 %v1922, %v1921
        %v2087 = vpack.c.b16 %v1924, %v1923
        %v2088 = vpack.c.b16 %v1926, %v1925
        %v2089 = vpack.c.b16 %v1928, %v1927
        %v2090 = vpack.c.b16 %v1930, %v1929
        %v2091 = vpack.c.b16 %v1932, %v1931
        %v2092 = vpack.c.b16 %v1934, %v1933
        %v2093 = vpack.c.b16 %v1936, %v1935
        %v2094 = vpack.c.b16 %v1938, %v1937
        %v2095 = vpack.c.b16 %v1940, %v1939
        %v2096 = vpack.c.b16 %v1942, %v1941
        %v2097 = vpack.c.b16 %v1944, %v1943
        %v2098 = vpack.c.b16 %v1946, %v1945
        %v2099 = vpack.c.b16 %v1948, %v1947
        %v2100 = vpack.c.b16 %v1950, %v1949
        %v2101 = vpack.c.b16 %v1952, %v1951
        %v2102 = vpack.c.b16 %v1954, %v1953
        %v2103 = vpack.c.b16 %v1956, %v1955
        %v2104 = vpack.c.b16 %v1958, %v1957
        %v2105 = vpack.c.b16 %v1960, %v1959
        %v2106 = vpack.c.b16 %v1962, %v1961
        %v2107 = vpack.c.b16 %v1964, %v1963
        %v2108 = vpack.c.b16 %v1966, %v1965
        %v2109 = vpack.c.b16 %v1968, %v1967
        %v2110 = vpack.c.b16 %v1970, %v1969
        %v2111 = vpack.c.b16 %v1972, %v1971
        %v2112 = vpack.c.b16 %v1974, %v1973
        %v2113 = vpack.c.b16 %v1976, %v1975
        %v2114 = vpack.c.b16 %v1978, %v1977
        %v2115 = vpack.c.b16 %v1980, %v1979
        %v2116 = vpack.c.b16 %v1982, %v1981
        %v2117 = vpack.c.b16 %v1984, %v1983
        %v2118 = vpack.c.b16 %v1986, %v1985
        %v2119 = vpack.c.b16 %v1988, %v1987
        %v2120 = vpack.c.b16 %v1990, %v1989
        %v2121 = vpack.c.b16 %v1992, %v1991
        %v2122 = vpack.c.b16 %v1994, %v1993
        %v2123 = vpack.c.b16 %v1996, %v1995
        %v2124 = vpack.c.b16 %v1998, %v1997
        %v2125 = vpack.c.b16 %v2000, %v1999
        %v2126 = vpack.c.b16 %v2002, %v2001
        %v2127 = vpack.c.b16 %v2004, %v2003
        %v2128 = vpack.c.b16 %v2006, %v2005
        %v2129 = vpack.c.b16 %v2008, %v2007
        %v2130 = vpack.c.b16 %v2010, %v2009
        %v2131 = vpack.c.b16 %v2012, %v2011
        %v2132 = vpack.c.b16 %v2014, %v2013
        %v2133 = vpack.c.b16 %v2016, %v2015
        %v2134 = vpack.c.b16 %v2018, %v2017
        %v2135 = vpack.c.b16 %v2020, %v2019
        %v2136 = vpack.c.b16 %v2022, %v2021
        %v2137 = vpack.c.b16 %v2024, %v2023
        %v2138 = vpack.c.b16 %v2026, %v2025
        %v2139 = vpack.c.b16 %v2028, %v2027
        %v2140 = vpack.c.b16 %v2030, %v2029
        %v2141 = vpack.c.b16 %v2032, %v2031
        %v2142 = vpack.c.b16 %v2034, %v2033
        %v2143 = vpack.c.b16 %v2036, %v2035
        %v2144 = vpack.c.b16 %v2038, %v2037
        %v2145 = vpack.c.b16 %v2040, %v2039
        %v2146 = vpack.c.b16 %v2042, %v2041
        %2251 = vmatprep.subr.bf16.mxu0 0
        %2252 = vmatpush1.bf16.msra.mxu0 %v2043
        %2253 = vmatprep.subr.bf16.mxu0 0
        %2254 = vmatpush1.bf16.msra.mxu0 %v2044
        %2255 = vmatprep.subr.bf16.mxu0 0
        %2256 = vmatpush1.bf16.msra.mxu0 %v2045
        %2257 = vmatprep.subr.bf16.mxu0 0
        %2258 = vmatpush1.bf16.msra.mxu0 %v2046
        %2259 = vmatprep.subr.bf16.mxu0 0
        %2260 = vmatpush1.bf16.msra.mxu0 %v2047
        %2261 = vmatprep.subr.bf16.mxu0 0
        %2262 = vmatpush1.bf16.msra.mxu0 %v2048
        %2263 = vmatprep.subr.bf16.mxu0 0
        %2264 = vmatpush1.bf16.msra.mxu0 %v2049
        %2265 = vmatprep.subr.bf16.mxu0 0
        %2266 = vmatpush1.bf16.msra.mxu0 %v2050
        %2267 = vmatprep.subr.bf16.mxu0 0
        %2268 = vmatpush1.bf16.msra.mxu0 %v2051
        %2269 = vmatprep.subr.bf16.mxu0 0
        %2270 = vmatpush1.bf16.msra.mxu0 %v2052
        %2271 = vmatprep.subr.bf16.mxu0 0
        %2272 = vmatpush1.bf16.msra.mxu0 %v2053
        %2273 = vmatprep.subr.bf16.mxu0 0
        %2274 = vmatpush1.bf16.msra.mxu0 %v2054
        %2275 = vmatprep.subr.bf16.mxu0 0
        %2276 = vmatpush1.bf16.msra.mxu0 %v2055
        %2277 = vmatprep.subr.bf16.mxu0 0
        %2278 = vmatpush1.bf16.msra.mxu0 %v2056
        %2279 = vmatprep.subr.bf16.mxu0 0
        %2280 = vmatpush1.bf16.msra.mxu0 %v2057
        %2281 = vmatprep.subr.bf16.mxu0 0
        %2282 = vmatpush1.bf16.msra.mxu0 %v2058
        %2283 = vmatprep.mubr.bf16.mxu0 %v1400
        %2284 = vmatmul.mubr.bf16.gmra.mrb[0].mxu0 %v1399
        %v2285 = vpop.f32.mrb[0].mxu0
        %v2286 = vadd.f32 %v1625, %v2285
        %v2287 = vpop.f32.mrb[0].mxu0
        %v2288 = vpop.f32.mrb[0].mxu0
        %v2289 = vadd.f32 %v1625, %v2288
        %v2290 = vpop.f32.mrb[0].mxu0
        %2291 = vdwg.mxu0
        %2292 = vmatprep.subr.bf16.mxu0 0
        %2293 = vmatpush1.bf16.msra.mxu0 %v2059
        %2294 = vmatprep.subr.bf16.mxu0 0
        %2295 = vmatpush1.bf16.msra.mxu0 %v2060
        %2296 = vmatprep.subr.bf16.mxu0 0
        %2297 = vmatpush1.bf16.msra.mxu0 %v2061
        %2298 = vmatprep.subr.bf16.mxu0 0
        %2299 = vmatpush1.bf16.msra.mxu0 %v2062
        %2300 = vmatprep.subr.bf16.mxu0 0
        %2301 = vmatpush1.bf16.msra.mxu0 %v2063
        %2302 = vmatprep.subr.bf16.mxu0 0
        %2303 = vmatpush1.bf16.msra.mxu0 %v2064
        %2304 = vmatprep.subr.bf16.mxu0 0
        %2305 = vmatpush1.bf16.msra.mxu0 %v2065
        %2306 = vmatprep.subr.bf16.mxu0 0
        %2307 = vmatpush1.bf16.msra.mxu0 %v2066
        %2308 = vmatprep.subr.bf16.mxu0 0
        %2309 = vmatpush1.bf16.msra.mxu0 %v2067
        %2310 = vmatprep.subr.bf16.mxu0 0
        %2311 = vmatpush1.bf16.msra.mxu0 %v2068
        %2312 = vmatprep.subr.bf16.mxu0 0
        %2313 = vmatpush1.bf16.msra.mxu0 %v2069
        %2314 = vmatprep.subr.bf16.mxu0 0
        %2315 = vmatpush1.bf16.msra.mxu0 %v2070
        %2316 = vmatprep.subr.bf16.mxu0 0
        %2317 = vmatpush1.bf16.msra.mxu0 %v2071
        %2318 = vmatprep.subr.bf16.mxu0 0
        %2319 = vmatpush1.bf16.msra.mxu0 %v2072
        %2320 = vmatprep.subr.bf16.mxu0 0
        %2321 = vmatpush1.bf16.msra.mxu0 %v2073
        %2322 = vmatprep.subr.bf16.mxu0 0
        %2323 = vmatpush1.bf16.msra.mxu0 %v2074
        %2324 = vmatprep.mubr.bf16.mxu0 %v1402
        %2325 = vmatmul.mubr.bf16.gmra.mrb[0].mxu0 %v1401
        %v2326 = vpop.f32.mrb[0].mxu0
        %v2327 = vadd.f32 %v2286, %v2326
        %v2328 = vpop.f32.mrb[0].mxu0
        %v2329 = vpop.f32.mrb[0].mxu0
        %v2330 = vadd.f32 %v2289, %v2329
        %v2331 = vpop.f32.mrb[0].mxu0
        %2332 = vdwg.mxu0
        %2333 = vmatprep.subr.bf16.mxu0 0
        %2334 = vmatpush1.bf16.msra.mxu0 %v2075
        %2335 = vmatprep.subr.bf16.mxu0 0
        %2336 = vmatpush1.bf16.msra.mxu0 %v2076
        %2337 = vmatprep.subr.bf16.mxu0 0
        %2338 = vmatpush1.bf16.msra.mxu0 %v2077
        %2339 = vmatprep.subr.bf16.mxu0 0
        %2340 = vmatpush1.bf16.msra.mxu0 %v2078
        %2341 = vmatprep.subr.bf16.mxu0 0
        %2342 = vmatpush1.bf16.msra.mxu0 %v2079
        %2343 = vmatprep.subr.bf16.mxu0 0
        %2344 = vmatpush1.bf16.msra.mxu0 %v2080
        %2345 = vmatprep.subr.bf16.mxu0 0
        %2346 = vmatpush1.bf16.msra.mxu0 %v2081
        %2347 = vmatprep.subr.bf16.mxu0 0
        %2348 = vmatpush1.bf16.msra.mxu0 %v2082
        %2349 = vmatprep.subr.bf16.mxu0 0
        %2350 = vmatpush1.bf16.msra.mxu0 %v2083
        %2351 = vmatprep.subr.bf16.mxu0 0
        %2352 = vmatpush1.bf16.msra.mxu0 %v2084
        %2353 = vmatprep.subr.bf16.mxu0 0
        %2354 = vmatpush1.bf16.msra.mxu0 %v2085
        %2355 = vmatprep.subr.bf16.mxu0 0
        %2356 = vmatpush1.bf16.msra.mxu0 %v2086
        %2357 = vmatprep.subr.bf16.mxu0 0
        %2358 = vmatpush1.bf16.msra.mxu0 %v2087
        %2359 = vmatprep.subr.bf16.mxu0 0
        %2360 = vmatpush1.bf16.msra.mxu0 %v2088
        %2361 = vmatprep.subr.bf16.mxu0 0
        %2362 = vmatpush1.bf16.msra.mxu0 %v2089
        %2363 = vmatprep.subr.bf16.mxu0 0
        %2364 = vmatpush1.bf16.msra.mxu0 %v2090
        %2365 = vmatprep.mubr.bf16.mxu0 %v1404
        %2366 = vmatmul.mubr.bf16.gmra.mrb[0].mxu0 %v1403
        %v2367 = vpop.f32.mrb[0].mxu0
        %v2368 = vadd.f32 %v2327, %v2367
        %v2369 = vpop.f32.mrb[0].mxu0
        %v2370 = vpop.f32.mrb[0].mxu0
        %v2371 = vadd.f32 %v2330, %v2370
        %v2372 = vpop.f32.mrb[0].mxu0
        %2373 = vdwg.mxu0
        %2374 = vmatprep.subr.bf16.mxu0 0
        %2375 = vmatpush1.bf16.msra.mxu0 %v2091
        %2376 = vmatprep.subr.bf16.mxu0 0
        %2377 = vmatpush1.bf16.msra.mxu0 %v2092
        %2378 = vmatprep.subr.bf16.mxu0 0
        %2379 = vmatpush1.bf16.msra.mxu0 %v2093
        %2380 = vmatprep.subr.bf16.mxu0 0
        %2381 = vmatpush1.bf16.msra.mxu0 %v2094
        %2382 = vmatprep.subr.bf16.mxu0 0
        %2383 = vmatpush1.bf16.msra.mxu0 %v2095
        %2384 = vmatprep.subr.bf16.mxu0 0
        %2385 = vmatpush1.bf16.msra.mxu0 %v2096
        %2386 = vmatprep.subr.bf16.mxu0 0
        %2387 = vmatpush1.bf16.msra.mxu0 %v2097
        %2388 = vmatprep.subr.bf16.mxu0 0
        %2389 = vmatpush1.bf16.msra.mxu0 %v2098
        %2390 = vmatprep.subr.bf16.mxu0 0
        %2391 = vmatpush1.bf16.msra.mxu0 %v2099
        %2392 = vmatprep.subr.bf16.mxu0 0
        %2393 = vmatpush1.bf16.msra.mxu0 %v2100
        %2394 = vmatprep.subr.bf16.mxu0 0
        %2395 = vmatpush1.bf16.msra.mxu0 %v2101
        %2396 = vmatprep.subr.bf16.mxu0 0
        %2397 = vmatpush1.bf16.msra.mxu0 %v2102
        %2398 = vmatprep.subr.bf16.mxu0 0
        %2399 = vmatpush1.bf16.msra.mxu0 %v2103
        %2400 = vmatprep.subr.bf16.mxu0 0
        %2401 = vmatpush1.bf16.msra.mxu0 %v2104
        %2402 = vmatprep.subr.bf16.mxu0 0
        %2403 = vmatpush1.bf16.msra.mxu0 %v2105
        %2404 = vmatprep.subr.bf16.mxu0 0
        %2405 = vmatpush1.bf16.msra.mxu0 %v2106
        %2406 = vmatprep.mubr.bf16.mxu0 %v1406
        %2407 = vmatmul.mubr.bf16.gmra.mrb[0].mxu0 %v1405
        %v2408 = vpop.f32.mrb[0].mxu0
        %v2409 = vadd.f32 %v2368, %v2408
        %v2410 = vpop.f32.mrb[0].mxu0
        %v2411 = vpop.f32.mrb[0].mxu0
        %v2412 = vadd.f32 %v2371, %v2411
        %v2413 = vpop.f32.mrb[0].mxu0
        %2414 = vdwg.mxu0
        %2415 = vmatprep.subr.bf16.mxu0 0
        %2416 = vmatpush1.bf16.msra.mxu0 %v2107
        %2417 = vmatprep.subr.bf16.mxu0 0
        %2418 = vmatpush1.bf16.msra.mxu0 %v2108
        %2419 = vmatprep.subr.bf16.mxu0 0
        %2420 = vmatpush1.bf16.msra.mxu0 %v2109
        %2421 = vmatprep.subr.bf16.mxu0 0
        %2422 = vmatpush1.bf16.msra.mxu0 %v2110
        %2423 = vmatprep.subr.bf16.mxu0 0
        %2424 = vmatpush1.bf16.msra.mxu0 %v2111
        %2425 = vmatprep.subr.bf16.mxu0 0
        %2426 = vmatpush1.bf16.msra.mxu0 %v2112
        %2427 = vmatprep.subr.bf16.mxu0 0
        %2428 = vmatpush1.bf16.msra.mxu0 %v2113
        %2429 = vmatprep.subr.bf16.mxu0 0
        %2430 = vmatpush1.bf16.msra.mxu0 %v2114
        %2431 = vmatprep.subr.bf16.mxu0 0
        %2432 = vmatpush1.bf16.msra.mxu0 %v2115
        %2433 = vmatprep.subr.bf16.mxu0 0
        %2434 = vmatpush1.bf16.msra.mxu0 %v2116
        %2435 = vmatprep.subr.bf16.mxu0 0
        %2436 = vmatpush1.bf16.msra.mxu0 %v2117
        %2437 = vmatprep.subr.bf16.mxu0 0
        %2438 = vmatpush1.bf16.msra.mxu0 %v2118
        %2439 = vmatprep.subr.bf16.mxu0 0
        %2440 = vmatpush1.bf16.msra.mxu0 %v2119
        %2441 = vmatprep.subr.bf16.mxu0 0
        %2442 = vmatpush1.bf16.msra.mxu0 %v2120
        %2443 = vmatprep.subr.bf16.mxu0 0
        %2444 = vmatpush1.bf16.msra.mxu0 %v2121
        %2445 = vmatprep.subr.bf16.mxu0 0
        %2446 = vmatpush1.bf16.msra.mxu0 %v2122
        %2447 = vmatprep.mubr.bf16.mxu0 %v1408
        %2448 = vmatmul.mubr.bf16.gmra.mrb[0].mxu0 %v1407
        %v2449 = vpop.f32.mrb[0].mxu0
        %v2450 = vadd.f32 %v2409, %v2449
        %v2451 = vpop.f32.mrb[0].mxu0
        %v2452 = vpop.f32.mrb[0].mxu0
        %v2453 = vadd.f32 %v2412, %v2452
        %v2454 = vpop.f32.mrb[0].mxu0
        %2455 = vdwg.mxu0
        %2456 = vmatprep.subr.bf16.mxu0 0
        %2457 = vmatpush1.bf16.msra.mxu0 %v2123
        %2458 = vmatprep.subr.bf16.mxu0 0
        %2459 = vmatpush1.bf16.msra.mxu0 %v2124
        %2460 = vmatprep.subr.bf16.mxu0 0
        %2461 = vmatpush1.bf16.msra.mxu0 %v2125
        %2462 = vmatprep.subr.bf16.mxu0 0
        %2463 = vmatpush1.bf16.msra.mxu0 %v2126
        %2464 = vmatprep.subr.bf16.mxu0 0
        %2465 = vmatpush1.bf16.msra.mxu0 %v2127
        %2466 = vmatprep.subr.bf16.mxu0 0
        %2467 = vmatpush1.bf16.msra.mxu0 %v2128
        %2468 = vmatprep.subr.bf16.mxu0 0
        %2469 = vmatpush1.bf16.msra.mxu0 %v2129
        %2470 = vmatprep.subr.bf16.mxu0 0
        %2471 = vmatpush1.bf16.msra.mxu0 %v2130
        %2472 = vmatprep.subr.bf16.mxu0 0
        %2473 = vmatpush1.bf16.msra.mxu0 %v2131
        %2474 = vmatprep.subr.bf16.mxu0 0
        %2475 = vmatpush1.bf16.msra.mxu0 %v2132
        %2476 = vmatprep.subr.bf16.mxu0 0
        %2477 = vmatpush1.bf16.msra.mxu0 %v2133
        %2478 = vmatprep.subr.bf16.mxu0 0
        %2479 = vmatpush1.bf16.msra.mxu0 %v2134
        %2480 = vmatprep.subr.bf16.mxu0 0
        %2481 = vmatpush1.bf16.msra.mxu0 %v2135
        %2482 = vmatprep.subr.bf16.mxu0 0
        %2483 = vmatpush1.bf16.msra.mxu0 %v2136
        %2484 = vmatprep.subr.bf16.mxu0 0
        %2485 = vmatpush1.bf16.msra.mxu0 %v2137
        %2486 = vmatprep.subr.bf16.mxu0 0
        %2487 = vmatpush1.bf16.msra.mxu0 %v2138
        %2488 = vmatprep.mubr.bf16.mxu0 %v1410
        %2489 = vmatmul.mubr.bf16.gmra.mrb[0].mxu0 %v1409
        %v2490 = vpop.f32.mrb[0].mxu0
        %v2491 = vadd.f32 %v2450, %v2490
        %v2492 = vpop.f32.mrb[0].mxu0
        %v2493 = vpop.f32.mrb[0].mxu0
        %v2494 = vadd.f32 %v2453, %v2493
        %v2495 = vpop.f32.mrb[0].mxu0
        %2496 = vdwg.mxu0
        %2497 = vmatprep.subr.bf16.mxu0 0
        %2498 = vmatpush1.bf16.msra.mxu0 %v2139
        %2499 = vmatprep.subr.bf16.mxu0 0
        %2500 = vmatpush1.bf16.msra.mxu0 %v2140
        %2501 = vmatprep.subr.bf16.mxu0 0
        %2502 = vmatpush1.bf16.msra.mxu0 %v2141
        %2503 = vmatprep.subr.bf16.mxu0 0
        %2504 = vmatpush1.bf16.msra.mxu0 %v2142
        %2505 = vmatprep.subr.bf16.mxu0 0
        %2506 = vmatpush1.bf16.msra.mxu0 %v2143
        %2507 = vmatprep.subr.bf16.mxu0 0
        %2508 = vmatpush1.bf16.msra.mxu0 %v2144
        %2509 = vmatprep.subr.bf16.mxu0 0
        %2510 = vmatpush1.bf16.msra.mxu0 %v2145
        %2511 = vmatprep.subr.bf16.mxu0 0
        %2512 = vmatpush1.bf16.msra.mxu0 %v2146
        %2513 = vmatprep.subr.bf16.mxu0 0
        %2514 = vmatpush1.bf16.msra.mxu0 0
        %2515 = vmatprep.subr.bf16.mxu0 0
        %2516 = vmatpush1.bf16.msra.mxu0 0
        %2517 = vmatprep.subr.bf16.mxu0 0
        %2518 = vmatpush1.bf16.msra.mxu0 0
        %2519 = vmatprep.subr.bf16.mxu0 0
        %2520 = vmatpush1.bf16.msra.mxu0 0
        %2521 = vmatprep.subr.bf16.mxu0 0
        %2522 = vmatpush1.bf16.msra.mxu0 0
        %2523 = vmatprep.subr.bf16.mxu0 0
        %2524 = vmatpush1.bf16.msra.mxu0 0
        %2525 = vmatprep.subr.bf16.mxu0 0
        %2526 = vmatpush1.bf16.msra.mxu0 0
        %2527 = vmatprep.subr.bf16.mxu0 0
        %2528 = vmatpush1.bf16.msra.mxu0 0
        %2529 = vmatprep.mubr.bf16.mxu0 0
        %2530 = vmatmul.mubr.bf16.gmra.mrb[0].mxu0 %v1411
        %v2531 = vpop.f32.mrb[0].mxu0
        %v2532 = vadd.f32 %v2491, %v2531
        %v2533 = vpop.f32.mrb[0].mxu0
        %v2534 = vpop.f32.mrb[0].mxu0
        %v2535 = vadd.f32 %v2494, %v2534
        %v2536 = vpop.f32.mrb[0].mxu0
        %2537 = vdwg.mxu0
        %2538 = vst [vmem:[%s342] sm:$0xff] %v2532
        %2539 = vst [vmem:[%s342 + $0x8] sm:$0xff] %v2535
        %v2540 = vsub.f32 1.0, %v355
        %v2541 = vlaneseq
        %v2542 = vshrl.u32 %v2541, 7
        %v2543 = vsub.s32 0, %v2542
        %v2544 = vrot.slane %v2540, %v2543
        %v2545 = vmul.f32 %v2532, %v2544
        %v2546 = vmul.f32 %v2535, %v2544
        %v2547 = vadd.f32 %v2545, %v362
        %v2548 = vadd.f32 %v2546, %v363
        %2549 = vst [vmem:[%s349] sm:$0xff] %v2547
        %2550 = vst [vmem:[%s349 + $0x8] sm:$0xff] %v2548
        %s2551 = sand.u32 %s169, 1
        %s2552 = scalar_lea.sflag [#allocation4], %s2551
        %s2553 = sand.u32 %s169, 1
        %s2554 = smul.addr %s2553, 16
        %s2555 = scalar_lea.vmem [#allocation10], %s2554
        %s2556 = sand.u32 %s195, 1
        %s2557 = scalar_lea.sflag [#allocation12], %s2556
        %s2558 = sand.u32 %s195, 1
        %s2559 = smul.addr %s2558, 16
        %s2560 = scalar_lea.vmem [#allocation11], %s2559
        // Predicated region
        $region61: #{tpu_custom_call.1} parent=43 // pred_check
          %p2561 = pneg %p179
        $region62: #{tpu_custom_call.1} parent=43 // pred_check_branch
          %2563 = sbr.rel (%p2561) target = $region64
        $region63: #{tpu_custom_call.1} parent=43 // pred_region
          %s2564 = smul.u32 2, %s30
          %s2566 = ssub.s32 256, 256
          %2567 = vsyncadd %s2552, %s2566
          %s2568 = smul.addr %s2564, 128
          %s2569 = scalar_lea.hbm %s6, %s2568
          %s2570 = sshll.u32 %s2555, 4
          %s2571 = int_to_ptr.vmem [resolvable:$true] %s2570
          %2576 = dma.vmem_to_hbm [thread:$0]  %s2571, 256, %s2569, %s2552, 128, 128, 8
        $region64: #{tpu_custom_call.1} parent=43 // pred_fallthru
          _
        // Predicated region
        $region65: #{tpu_custom_call.1} parent=43 // pred_check
          %p2577 = pneg %p205
        $region66: #{tpu_custom_call.1} parent=43 // pred_check_branch
          %2579 = sbr.rel (%p2577) target = $region68
        $region67: #{tpu_custom_call.1} parent=43 // pred_region
          %s2580 = smul.u32 2, %s30
          %s2582 = ssub.s32 256, 256
          %2583 = vsyncadd %s2557, %s2582
          %s2584 = smul.addr %s2580, 128
          %s2585 = scalar_lea.hbm %s7, %s2584
          %s2586 = sshll.u32 %s2560, 4
          %s2587 = int_to_ptr.vmem [resolvable:$true] %s2586
          %2592 = dma.vmem_to_hbm [thread:$0]  %s2587, 256, %s2585, %s2557, 128, 128, 8
        $region68: #{tpu_custom_call.1} parent=43 // pred_fallthru
          _
      $region44: #{tpu_custom_call.1} parent=5 // pred_fallthru
        _
      %p2593 = scmp.le.s32.totalorder 2, %s25
      // Predicated region
      $region69: #{tpu_custom_call.1} parent=5 // pred_check
        %p2594 = pneg %p2593
      $region70: #{tpu_custom_call.1} parent=5 // pred_check_branch
        %2596 = sbr.rel (%p2594) target = $region72
      $region71: #{tpu_custom_call.1} parent=5 // pred_region
        %s2597 = ssub.s32 %s25, 2
        // Predicated region
        $region73: #{tpu_custom_call.1} parent=71 // pred_check
          %p2598 = pneg %p185
        $region74: #{tpu_custom_call.1} parent=71 // pred_check_branch
          %2600 = sbr.rel (%p2598) target = $region76
        $region75: #{tpu_custom_call.1} parent=71 // pred_region
          %s2601 = sand.u32 %s170, 1
          %s2602 = scalar_lea.sflag [#allocation4], %s2601
          %s2603 = sand.u32 %s170, 1
          %s2604 = smul.addr %s2603, 16
          %s2605 = scalar_lea.vmem [#allocation10], %s2604
          %2606 = dma.done %s2602, 256
        $region76: #{tpu_custom_call.1} parent=71 // pred_fallthru
          _
        // Predicated region
        $region77: #{tpu_custom_call.1} parent=71 // pred_check
          %p2607 = pneg %p211
        $region78: #{tpu_custom_call.1} parent=71 // pred_check_branch
          %2609 = sbr.rel (%p2607) target = $region80
        $region79: #{tpu_custom_call.1} parent=71 // pred_region
          %s2610 = sand.u32 %s196, 1
          %s2611 = scalar_lea.sflag [#allocation12], %s2610
          %s2612 = sand.u32 %s196, 1
          %s2613 = smul.addr %s2612, 16
          %s2614 = scalar_lea.vmem [#allocation11], %s2613
          %2615 = dma.done %s2611, 256
        $region80: #{tpu_custom_call.1} parent=71 // pred_fallthru
          _
      $region72: #{tpu_custom_call.1} parent=5 // pred_fallthru
        _
    $region6: #{tpu_custom_call.1} parent=1 // loop_footer
      %s29 = sadd.s32 1, %s25
    $region7: #{tpu_custom_call.1} parent=1 // loop_footer_branch
      %24 = sbr.rel target = $region3
    $region8: #{tpu_custom_call.1} parent=1 // loop_exit
      _
    %2616 = vsyncpa [#allocation3], 1
    %s2617 = scalar_lea.sflag [#allocation3], 1
    %2618 = vsyncpa %s2617, 1
    %2619 = vsyncpa [#allocation6], 1
    %2620 = vsyncpa [#allocation9], 1
    %2621 = vsyncpa [#allocation4], 1
    %s2622 = scalar_lea.sflag [#allocation4], 1
    %2623 = vsyncpa %s2622, 1
    %2624 = vsyncpa [#allocation12], 1
    %s2625 = scalar_lea.sflag [#allocation12], 1
    %2626 = vsyncpa %s2625, 1

</llo_original>
